<compile_context>
chip_gen: v7x
topology: tpu7x:2x2x1
jax: 0.10.0
libtpu: 0.0.40
codegen_flags: <defaults>
</compile_context>

<pallas_src>
import jax
import jax.numpy as jnp
from jax.experimental import pallas as pl
from jax.experimental.pallas import tpu as pltpu


def _se_conv1x1_kernel(s_ref, w_ref, x_ref, o_ref):
    # s_ref: (1, C_in) gate logits, w_ref: (C_out, C_in) bf16 weight,
    # x_ref: (C_in, BW) f32 activation tile, o_ref: (C_out, BW) f32 output tile.
    gate = jax.nn.sigmoid(s_ref[...].astype(jnp.float32))            # (1, C_in)  EUP, tiny
    w_scaled = (w_ref[...].astype(jnp.float32) * gate).astype(jnp.bfloat16)  # fold gate (f32 math)
    x_bf16 = x_ref[...].astype(jnp.bfloat16)                         # in-VMEM cast, no extra HBM pass
    o_ref[...] = jnp.dot(
        w_scaled, x_bf16, preferred_element_type=jnp.float32
    ).astype(o_ref.dtype)                                            # (C_out, BW)  MXU, f32 acc


def _pick_blk_w(hw):
    """Single full-HW block on v5e/v6e; two 128-multiple tiles on v7x (one per TC)."""
    try:
        kind = jax.devices()[0].device_kind.lower()
    except Exception:
        kind = ""
    if ("v7" in kind or "7x" in kind) and hw > 256:
        blk = 128 * pl.cdiv(pl.cdiv(hw, 2), 128)   # e.g. 784 -> 512 (+ 272 remainder tile)
        return min(blk, hw)
    return hw


def sigmoid_mul_conv1x1(x219, x215, weight, *, blk_w=None):
    """x219: (1, C_in, 1, 1), x215: (1, C_in, H, W), weight: (C_out, C_in, 1, 1)."""
    n, c_in, h, w = x215.shape
    assert n == 1
    c_out = weight.shape[0]
    hw = h * w

    # Layout plumbing (no heavy dtype conversion passes in the wrapper).
    x2d = x215.reshape(c_in, hw)                              # (C_in, HW)   f32, cast in-kernel
    s2d = x219.reshape(1, c_in)                               # (1, C_in)    lane-major gate logits
    w2d = weight.reshape(c_out, c_in).astype(jnp.bfloat16)    # (C_out, C_in) tiny, halve its DMA

    if blk_w is None:
        blk_w = _pick_blk_w(hw)
    blk_w = min(blk_w, hw)
    grid = (pl.cdiv(hw, blk_w),)

    cost = pl.CostEstimate(
        flops=2 * c_out * c_in * hw + c_out * c_in,
        transcendentals=c_in * grid[0],
        bytes_accessed=(c_in * hw * 4          # x (f32)
                        + c_out * c_in * 2     # w (bf16)
                        + c_in * 4             # gate
                        + c_out * hw * 4),     # out (f32)
    )

    out2d = pl.pallas_call(
        _se_conv1x1_kernel,
        out_shape=jax.ShapeDtypeStruct((c_out, hw), jnp.float32),
        grid_spec=pltpu.PrefetchScalarGridSpec(
            num_scalar_prefetch=0,
            grid=grid,
            in_specs=[
                pl.BlockSpec((1, c_in), lambda j: (0, 0)),      # gate: resident
                pl.BlockSpec((c_out, c_in), lambda j: (0, 0)),  # weight: resident
                pl.BlockSpec((c_in, blk_w), lambda j: (0, j)),  # activation: tiled over HW
            ],
            out_specs=pl.BlockSpec((c_out, blk_w), lambda j: (0, j)),
        ),
        compiler_params=pltpu.CompilerParams(
            dimension_semantics=("parallel",),  # shards the (<=2) spatial tiles across v7x TCs
        ),
        cost_estimate=cost,
    )(s2d, w2d, x2d)

    return out2d.reshape(1, c_out, h, w).astype(x215.dtype)


if __name__ == "__main__":
    key = jax.random.PRNGKey(0)
    k1, k2, k3 = jax.random.split(key, 3)

    # Shapes implied by the module: Conv2d(480 -> 80, 1x1), 28x28 spatial, N=1.
    C_IN, C_OUT, H, W = 480, 80, 28, 28

    x215 = jax.random.normal(k1, (1, C_IN, H, W), dtype=jnp.float32)
    x219 = jax.random.normal(k2, (1, C_IN, 1, 1), dtype=jnp.float32)
    weight = jax.random.normal(k3, (C_OUT, C_IN, 1, 1), dtype=jnp.float32) * (
        1.0 / jnp.sqrt(C_IN)
    )

    out = sigmoid_mul_conv1x1(x219, x215, weight)
    jax.block_until_ready(out)

    # reference check in plain JAX (f32 everywhere)
    ref = jnp.einsum(
        "oi,nihw->nohw",
        weight.reshape(C_OUT, C_IN),
        jax.nn.sigmoid(x219) * x215,
    )
    assert out.shape == (1, C_OUT, H, W)
    # bf16 MXU inputs (weight & activation) -> looser tolerance than pure f32
    assert jnp.allclose(out, ref, atol=2e-2, rtol=2e-2)

    print("KERNEL_OK")
</pallas_src>

<mosaic_0001>
module attributes {stable_mosaic.version = 11 : i64} {
  func.func @_se_conv1x1_kernel(%arg0: i32, %arg1: memref<1x480xf32, #tpu.memory_space<vmem>>, %arg2: memref<80x480xbf16, #tpu.memory_space<vmem>>, %arg3: memref<480x784xf32, #tpu.memory_space<vmem>>, %arg4: memref<80x784xf32, #tpu.memory_space<vmem>>) attributes {dimension_semantics = [#tpu.dimension_semantics<parallel>], iteration_bounds = array<i64: 1>, scalar_prefetch = 0 : i64, scratch_operands = 0 : i64, tpu.core_type = #tpu.core_type<tc>, window_params = [{pipeline_mode = #tpu.pipeline_mode<synchronous>, transform_indices = @transform_0, window_bounds = array<i64: 1, 480>}, {pipeline_mode = #tpu.pipeline_mode<synchronous>, transform_indices = @transform_1, window_bounds = array<i64: 80, 480>}, {transform_indices = @transform_2, window_bounds = array<i64: 480, 784>}, {transform_indices = @transform_3, window_bounds = array<i64: 80, 784>}]} {
    %c0 = arith.constant 0 : index
    %c0_0 = arith.constant 0 : index
    %0 = vector.load %arg1[%c0, %c0_0] : memref<1x480xf32, #tpu.memory_space<vmem>>, vector<1x480xf32>
    %1 = arith.negf %0 : vector<1x480xf32>
    %2 = math.exp %1 : vector<1x480xf32>
    %cst = arith.constant 1.000000e+00 : f32
    %3 = vector.broadcast %cst : f32 to vector<1x480xf32>
    %4 = arith.addf %3, %2 : vector<1x480xf32>
    %5 = arith.divf %3, %4 : vector<1x480xf32>
    %c0_1 = arith.constant 0 : index
    %c0_2 = arith.constant 0 : index
    %6 = vector.load %arg2[%c0_1, %c0_2] : memref<80x480xbf16, #tpu.memory_space<vmem>>, vector<80x480xbf16>
    %7 = arith.extf %6 : vector<80x480xbf16> to vector<80x480xf32>
    %8 = vector.broadcast %5 : vector<1x480xf32> to vector<80x480xf32>
    %9 = arith.mulf %7, %8 : vector<80x480xf32>
    %10 = arith.truncf %9 : vector<80x480xf32> to vector<80x480xbf16>
    %c0_3 = arith.constant 0 : index
    %c0_4 = arith.constant 0 : index
    %11 = vector.load %arg3[%c0_3, %c0_4] : memref<480x784xf32, #tpu.memory_space<vmem>>, vector<480x784xf32>
    %12 = arith.truncf %11 : vector<480x784xf32> to vector<480x784xbf16>
    %cst_5 = arith.constant dense<0.000000e+00> : vector<80x784xf32>
    %13 = tpu.matmul %10, %12, %cst_5 {dimension_numbers = #tpu.dot_dimension_numbers<[1], [0], [0], [1], [0, 0, 1, 1], [], []>} : vector<80x480xbf16>, vector<480x784xbf16>, vector<80x784xf32> -> vector<80x784xf32>
    %c0_6 = arith.constant 0 : index
    %c0_7 = arith.constant 0 : index
    %14 = vector.load %arg4[%c0_6, %c0_7] : memref<80x784xf32, #tpu.memory_space<vmem>>, vector<80x784xf32>
    tpu.vector_store %arg4[%c0_6, %c0_7], %13 {strides = array<i32>} : memref<80x784xf32, #tpu.memory_space<vmem>>, vector<80x784xf32>,
    return
  }
  func.func @transform_0(%arg0: i32) -> (i32, i32) {
    %c0_i32 = arith.constant 0 : i32
    %c0_i32_0 = arith.constant 0 : i32
    %c0_i32_1 = arith.constant 0 : i32
    return %c0_i32, %c0_i32_0 : i32, i32
  }
  func.func @transform_1(%arg0: i32) -> (i32, i32) {
    %c0_i32 = arith.constant 0 : i32
    %c0_i32_0 = arith.constant 0 : i32
    %c0_i32_1 = arith.constant 0 : i32
    return %c0_i32, %c0_i32_0 : i32, i32
  }
  func.func @transform_2(%arg0: i32) -> (i32, i32) {
    %c0_i32 = arith.constant 0 : i32
    %c0_i32_0 = arith.constant 0 : i32
    return %c0_i32, %arg0 : i32, i32
  }
  func.func @transform_3(%arg0: i32) -> (i32, i32) {
    %c0_i32 = arith.constant 0 : i32
    %c0_i32_0 = arith.constant 0 : i32
    return %c0_i32, %arg0 : i32, i32
  }
}

</mosaic_0001>

<llo_original>
// kernel: tpu_custom_call.1
$region0: #{tpu_custom_call.1}
  #allocation0 [shape = 'u32[]', space=smem, size = 0x4, offset = 0x4, fixed_abs, tag = 'smem constant byte address 0x4 - core index']
  #allocation1 [shape = 'u32[144,128]{1,0:T(1,128)}', space=vmem, size = 0x12000, scoped, tag = 'internal scratch']
  %s0 = inlined_call_operand.vmem [shape: f32[1,480], index: 0, kind: input, shape index: {}]
  %s1 = inlined_call_operand.vmem [shape: bf16[80,480], index: 1, kind: input, shape index: {}]
  %s2 = inlined_call_operand.vmem [shape: f32[480,784], index: 2, kind: input, shape index: {}]
  %s3 = inlined_call_operand.hbm [shape: f32[80,784], index: 3, kind: output, shape index: {}]
  %s4 = sld [smem:[#allocation0]]
  $region22: #{tpu_custom_call.1} parent=0
    _
  %s6 = ssub.s32 1, %s4
  %s7 = scalar_select 0, %s6, %s4
  $region1: #{tpu_custom_call.1} parent=0
    #allocation2 [shape = 'u8[286720]{0}', space=vmem, size = 0x46000, scoped, tag = 'output window, operand 0, single buffered']
    #allocation3 [shape = 's32[1]{0}', space=sflag, size = 0x4, scoped, tag = 'scoped memory for tpu_custom_call.1']
    %8 = vsyncpa [#allocation3], 0
    // Predicated region
    $region2: #{tpu_custom_call.1} parent=1 // pred_check
      _
    $region3: #{tpu_custom_call.1} parent=1 // pred_check_branch
      %10 = sbr.rel (0) target = $region5
    $region4: #{tpu_custom_call.1} parent=1 // pred_region
      _
    $region5: #{tpu_custom_call.1} parent=1 // pred_fallthru
      _
    // Predicated region
    $region6: #{tpu_custom_call.1} parent=1 // pred_check
      _
    $region7: #{tpu_custom_call.1} parent=1 // pred_check_branch
      %12 = sbr.rel (0) target = $region9
    $region8: #{tpu_custom_call.1} parent=1 // pred_region
      _
    $region9: #{tpu_custom_call.1} parent=1 // pred_fallthru
      _
    // Predicated region
    $region10: #{tpu_custom_call.1} parent=1 // pred_check
      _
    $region11: #{tpu_custom_call.1} parent=1 // pred_check_branch
      %14 = sbr.rel (0) target = $region13
    $region12: #{tpu_custom_call.1} parent=1 // pred_region
      _
    $region13: #{tpu_custom_call.1} parent=1 // pred_fallthru
      _
    %v16 = vld [vmem:[%s0] sm:$0xf]
    %v17 = vxor.u32 %v16, 2147483648
    %v18 = vmul.f32 %v17, 1.442695
    %v19 = vpow.pop %v18
    %v20 = vadd.f32 %v19, 1.0
    %v21 = vrcp.pop %v20
    %v22 = vmul.f32 1.0, %v21
    %v23 = vld [vmem:[%s1] sm:$0xff]
    %v24 = vld [vmem:[%s1 + $0x8] sm:$0xff]
    %v25 = vld [vmem:[%s1 + $0x10] sm:$0xff]
    %v26 = vld [vmem:[%s1 + $0x18] sm:$0xff]
    %v27 = vld [vmem:[%s1 + $0x20] sm:$0xff]
    %v28 = vld [vmem:[%s1 + $0x28] sm:$0xff]
    %v29 = vld [vmem:[%s1 + $0x30] sm:$0xff]
    %v30 = vld [vmem:[%s1 + $0x38] sm:$0xff]
    %v31 = vld [vmem:[%s1 + $0x40] sm:$0xff]
    %v32 = vld [vmem:[%s1 + $0x48] sm:$0xff]
    %v33 = vld [vmem:[%s1 + $0x50] sm:$0xff]
    %v34 = vld [vmem:[%s1 + $0x58] sm:$0xff]
    %v35 = vld [vmem:[%s1 + $0x60] sm:$0xff]
    %v36 = vld [vmem:[%s1 + $0x68] sm:$0xff]
    %v37 = vld [vmem:[%s1 + $0x70] sm:$0xff]
    %v38 = vld [vmem:[%s1 + $0x78] sm:$0xff]
    %v39 = vld [vmem:[%s1 + $0x80] sm:$0xff]
    %v40 = vld [vmem:[%s1 + $0x88] sm:$0xff]
    %v41 = vld [vmem:[%s1 + $0x90] sm:$0xff]
    %v42 = vld [vmem:[%s1 + $0x98] sm:$0xff]
    %v43 = vunpack.c.l.bf16 %v23
    %v44 = vunpack.c.h.bf16 %v23
    %v45 = vunpack.c.l.bf16 %v24
    %v46 = vunpack.c.h.bf16 %v24
    %v47 = vunpack.c.l.bf16 %v25
    %v48 = vunpack.c.h.bf16 %v25
    %v49 = vunpack.c.l.bf16 %v26
    %v50 = vunpack.c.h.bf16 %v26
    %v51 = vunpack.c.l.bf16 %v27
    %v52 = vunpack.c.h.bf16 %v27
    %v53 = vunpack.c.l.bf16 %v28
    %v54 = vunpack.c.h.bf16 %v28
    %v55 = vunpack.c.l.bf16 %v29
    %v56 = vunpack.c.h.bf16 %v29
    %v57 = vunpack.c.l.bf16 %v30
    %v58 = vunpack.c.h.bf16 %v30
    %v59 = vunpack.c.l.bf16 %v31
    %v60 = vunpack.c.h.bf16 %v31
    %v61 = vunpack.c.l.bf16 %v32
    %v62 = vunpack.c.h.bf16 %v32
    %v63 = vunpack.c.l.bf16 %v33
    %v64 = vunpack.c.h.bf16 %v33
    %v65 = vunpack.c.l.bf16 %v34
    %v66 = vunpack.c.h.bf16 %v34
    %v67 = vunpack.c.l.bf16 %v35
    %v68 = vunpack.c.h.bf16 %v35
    %v69 = vunpack.c.l.bf16 %v36
    %v70 = vunpack.c.h.bf16 %v36
    %v71 = vunpack.c.l.bf16 %v37
    %v72 = vunpack.c.h.bf16 %v37
    %v73 = vunpack.c.l.bf16 %v38
    %v74 = vunpack.c.h.bf16 %v38
    %v75 = vunpack.c.l.bf16 %v39
    %v76 = vunpack.c.h.bf16 %v39
    %v77 = vunpack.c.l.bf16 %v40
    %v78 = vunpack.c.h.bf16 %v40
    %v79 = vunpack.c.l.bf16 %v41
    %v80 = vunpack.c.h.bf16 %v41
    %v81 = vunpack.c.l.bf16 %v42
    %v82 = vunpack.c.h.bf16 %v42
    %v84 = vlaneseq
    %v85 = vshrl.u32 %v84, 7
    %v86 = vsub.s32 0, %v85
    %v87 = vrot.slane %v22, %v86
    %v88 = vlaneseq
    %v89 = vshrl.u32 %v88, 7
    %v90 = vsub.s32 1, %v89
    %v91 = vrot.slane %v22, %v90
    %v92 = vlaneseq
    %v93 = vshrl.u32 %v92, 7
    %v94 = vsub.s32 2, %v93
    %v95 = vrot.slane %v22, %v94
    %v96 = vlaneseq
    %v97 = vshrl.u32 %v96, 7
    %v98 = vsub.s32 3, %v97
    %v99 = vrot.slane %v22, %v98
    %v104 = vmul.f32 %v43, %v87
    %v105 = vmul.f32 %v44, %v91
    %v106 = vmul.f32 %v45, %v95
    %v107 = vmul.f32 %v46, %v99
    %v108 = vmul.f32 %v47, %v87
    %v109 = vmul.f32 %v48, %v91
    %v110 = vmul.f32 %v49, %v95
    %v111 = vmul.f32 %v50, %v99
    %v112 = vmul.f32 %v51, %v87
    %v113 = vmul.f32 %v52, %v91
    %v114 = vmul.f32 %v53, %v95
    %v115 = vmul.f32 %v54, %v99
    %v116 = vmul.f32 %v55, %v87
    %v117 = vmul.f32 %v56, %v91
    %v118 = vmul.f32 %v57, %v95
    %v119 = vmul.f32 %v58, %v99
    %v120 = vmul.f32 %v59, %v87
    %v121 = vmul.f32 %v60, %v91
    %v122 = vmul.f32 %v61, %v95
    %v123 = vmul.f32 %v62, %v99
    %v124 = vmul.f32 %v63, %v87
    %v125 = vmul.f32 %v64, %v91
    %v126 = vmul.f32 %v65, %v95
    %v127 = vmul.f32 %v66, %v99
    %v128 = vmul.f32 %v67, %v87
    %v129 = vmul.f32 %v68, %v91
    %v130 = vmul.f32 %v69, %v95
    %v131 = vmul.f32 %v70, %v99
    %v132 = vmul.f32 %v71, %v87
    %v133 = vmul.f32 %v72, %v91
    %v134 = vmul.f32 %v73, %v95
    %v135 = vmul.f32 %v74, %v99
    %v136 = vmul.f32 %v75, %v87
    %v137 = vmul.f32 %v76, %v91
    %v138 = vmul.f32 %v77, %v95
    %v139 = vmul.f32 %v78, %v99
    %v140 = vmul.f32 %v79, %v87
    %v141 = vmul.f32 %v80, %v91
    %v142 = vmul.f32 %v81, %v95
    %v143 = vmul.f32 %v82, %v99
    %v144 = vpack.c.bf16 %v108, %v104
    %v145 = vpack.c.bf16 %v109, %v105
    %v146 = vpack.c.bf16 %v110, %v106
    %v147 = vpack.c.bf16 %v111, %v107
    %v148 = vpack.c.bf16 %v116, %v112
    %v149 = vpack.c.bf16 %v117, %v113
    %v150 = vpack.c.bf16 %v118, %v114
    %v151 = vpack.c.bf16 %v119, %v115
    %v152 = vpack.c.bf16 %v124, %v120
    %v153 = vpack.c.bf16 %v125, %v121
    %v154 = vpack.c.bf16 %v126, %v122
    %v155 = vpack.c.bf16 %v127, %v123
    %v156 = vpack.c.bf16 %v132, %v128
    %v157 = vpack.c.bf16 %v133, %v129
    %v158 = vpack.c.bf16 %v134, %v130
    %v159 = vpack.c.bf16 %v135, %v131
    %v160 = vpack.c.bf16 %v140, %v136
    %v161 = vpack.c.bf16 %v141, %v137
    %v162 = vpack.c.bf16 %v142, %v138
    %v163 = vpack.c.bf16 %v143, %v139
    %v164 = vld [vmem:[%s2] sm:$0xff]
    %v165 = vld [vmem:[%s2 + $0x8] sm:$0xff]
    %v166 = vld [vmem:[%s2 + $0x10] sm:$0xff]
    %v167 = vld [vmem:[%s2 + $0x18] sm:$0xff]
    %v168 = vld [vmem:[%s2 + $0x20] sm:$0xff]
    %v169 = vld [vmem:[%s2 + $0x28] sm:$0xff]
    %v170 = vld [vmem:[%s2 + $0x30] sm:$0xff]
    %v171 = vld [vmem:[%s2 + $0x38] sm:$0xff]
    %v172 = vld [vmem:[%s2 + $0x40] sm:$0xff]
    %v173 = vld [vmem:[%s2 + $0x48] sm:$0xff]
    %v174 = vld [vmem:[%s2 + $0x50] sm:$0xff]
    %v175 = vld [vmem:[%s2 + $0x58] sm:$0xff]
    %v176 = vld [vmem:[%s2 + $0x60] sm:$0xff]
    %v177 = vld [vmem:[%s2 + $0x68] sm:$0xff]
    %v178 = vld [vmem:[%s2 + $0x70] sm:$0xff]
    %v179 = vld [vmem:[%s2 + $0x78] sm:$0xff]
    %v180 = vld [vmem:[%s2 + $0x80] sm:$0xff]
    %v181 = vld [vmem:[%s2 + $0x88] sm:$0xff]
    %v182 = vld [vmem:[%s2 + $0x90] sm:$0xff]
    %v183 = vld [vmem:[%s2 + $0x98] sm:$0xff]
    %v184 = vld [vmem:[%s2 + $0xa0] sm:$0xff]
    %v185 = vld [vmem:[%s2 + $0xa8] sm:$0xff]
    %v186 = vld [vmem:[%s2 + $0xb0] sm:$0xff]
    %v187 = vld [vmem:[%s2 + $0xb8] sm:$0xff]
    %v188 = vld [vmem:[%s2 + $0xc0] sm:$0xff]
    %v189 = vld [vmem:[%s2 + $0xc8] sm:$0xff]
    %v190 = vld [vmem:[%s2 + $0xd0] sm:$0xff]
    %v191 = vld [vmem:[%s2 + $0xd8] sm:$0xff]
    %v192 = vld [vmem:[%s2 + $0xe0] sm:$0xff]
    %v193 = vld [vmem:[%s2 + $0xe8] sm:$0xff]
    %v194 = vld [vmem:[%s2 + $0xf0] sm:$0xff]
    %v195 = vld [vmem:[%s2 + $0xf8] sm:$0xff]
    %v196 = vld [vmem:[%s2 + $0x100] sm:$0xff]
    %v197 = vld [vmem:[%s2 + $0x108] sm:$0xff]
    %v198 = vld [vmem:[%s2 + $0x110] sm:$0xff]
    %v199 = vld [vmem:[%s2 + $0x118] sm:$0xff]
    %v200 = vld [vmem:[%s2 + $0x120] sm:$0xff]
    %v201 = vld [vmem:[%s2 + $0x128] sm:$0xff]
    %v202 = vld [vmem:[%s2 + $0x130] sm:$0xff]
    %v203 = vld [vmem:[%s2 + $0x138] sm:$0xff]
    %v204 = vld [vmem:[%s2 + $0x140] sm:$0xff]
    %v205 = vld [vmem:[%s2 + $0x148] sm:$0xff]
    %v206 = vld [vmem:[%s2 + $0x150] sm:$0xff]
    %v207 = vld [vmem:[%s2 + $0x158] sm:$0xff]
    %v208 = vld [vmem:[%s2 + $0x160] sm:$0xff]
    %v209 = vld [vmem:[%s2 + $0x168] sm:$0xff]
    %v210 = vld [vmem:[%s2 + $0x170] sm:$0xff]
    %v211 = vld [vmem:[%s2 + $0x178] sm:$0xff]
    %v212 = vld [vmem:[%s2 + $0x180] sm:$0xff]
    %v213 = vld [vmem:[%s2 + $0x188] sm:$0xff]
    %v214 = vld [vmem:[%s2 + $0x190] sm:$0xff]
    %v215 = vld [vmem:[%s2 + $0x198] sm:$0xff]
    %v216 = vld [vmem:[%s2 + $0x1a0] sm:$0xff]
    %v217 = vld [vmem:[%s2 + $0x1a8] sm:$0xff]
    %v218 = vld [vmem:[%s2 + $0x1b0] sm:$0xff]
    %v219 = vld [vmem:[%s2 + $0x1b8] sm:$0xff]
    %v220 = vld [vmem:[%s2 + $0x1c0] sm:$0xff]
    %v221 = vld [vmem:[%s2 + $0x1c8] sm:$0xff]
    %v222 = vld [vmem:[%s2 + $0x1d0] sm:$0xff]
    %v223 = vld [vmem:[%s2 + $0x1d8] sm:$0xff]
    %v224 = vld [vmem:[%s2 + $0x1e0] sm:$0xff]
    %v225 = vld [vmem:[%s2 + $0x1e8] sm:$0xff]
    %v226 = vld [vmem:[%s2 + $0x1f0] sm:$0xff]
    %v227 = vld [vmem:[%s2 + $0x1f8] sm:$0xff]
    %v228 = vld [vmem:[%s2 + $0x200] sm:$0xff]
    %v229 = vld [vmem:[%s2 + $0x208] sm:$0xff]
    %v230 = vld [vmem:[%s2 + $0x210] sm:$0xff]
    %v231 = vld [vmem:[%s2 + $0x218] sm:$0xff]
    %v232 = vld [vmem:[%s2 + $0x220] sm:$0xff]
    %v233 = vld [vmem:[%s2 + $0x228] sm:$0xff]
    %v234 = vld [vmem:[%s2 + $0x230] sm:$0xff]
    %v235 = vld [vmem:[%s2 + $0x238] sm:$0xff]
    %v236 = vld [vmem:[%s2 + $0x240] sm:$0xff]
    %v237 = vld [vmem:[%s2 + $0x248] sm:$0xff]
    %v238 = vld [vmem:[%s2 + $0x250] sm:$0xff]
    %v239 = vld [vmem:[%s2 + $0x258] sm:$0xff]
    %v240 = vld [vmem:[%s2 + $0x260] sm:$0xff]
    %v241 = vld [vmem:[%s2 + $0x268] sm:$0xff]
    %v242 = vld [vmem:[%s2 + $0x270] sm:$0xff]
    %v243 = vld [vmem:[%s2 + $0x278] sm:$0xff]
    %v244 = vld [vmem:[%s2 + $0x280] sm:$0xff]
    %v245 = vld [vmem:[%s2 + $0x288] sm:$0xff]
    %v246 = vld [vmem:[%s2 + $0x290] sm:$0xff]
    %v247 = vld [vmem:[%s2 + $0x298] sm:$0xff]
    %v248 = vld [vmem:[%s2 + $0x2a0] sm:$0xff]
    %v249 = vld [vmem:[%s2 + $0x2a8] sm:$0xff]
    %v250 = vld [vmem:[%s2 + $0x2b0] sm:$0xff]
    %v251 = vld [vmem:[%s2 + $0x2b8] sm:$0xff]
    %v252 = vld [vmem:[%s2 + $0x2c0] sm:$0xff]
    %v253 = vld [vmem:[%s2 + $0x2c8] sm:$0xff]
    %v254 = vld [vmem:[%s2 + $0x2d0] sm:$0xff]
    %v255 = vld [vmem:[%s2 + $0x2d8] sm:$0xff]
    %v256 = vld [vmem:[%s2 + $0x2e0] sm:$0xff]
    %v257 = vld [vmem:[%s2 + $0x2e8] sm:$0xff]
    %v258 = vld [vmem:[%s2 + $0x2f0] sm:$0xff]
    %v259 = vld [vmem:[%s2 + $0x2f8] sm:$0xff]
    %v260 = vld [vmem:[%s2 + $0x300] sm:$0xff]
    %v261 = vld [vmem:[%s2 + $0x308] sm:$0xff]
    %v262 = vld [vmem:[%s2 + $0x310] sm:$0xff]
    %v263 = vld [vmem:[%s2 + $0x318] sm:$0xff]
    %v264 = vld [vmem:[%s2 + $0x320] sm:$0xff]
    %v265 = vld [vmem:[%s2 + $0x328] sm:$0xff]
    %v266 = vld [vmem:[%s2 + $0x330] sm:$0xff]
    %v267 = vld [vmem:[%s2 + $0x338] sm:$0xff]
    %v268 = vld [vmem:[%s2 + $0x340] sm:$0xff]
    %v269 = vld [vmem:[%s2 + $0x348] sm:$0xff]
    %v270 = vld [vmem:[%s2 + $0x350] sm:$0xff]
    %v271 = vld [vmem:[%s2 + $0x358] sm:$0xff]
    %v272 = vld [vmem:[%s2 + $0x360] sm:$0xff]
    %v273 = vld [vmem:[%s2 + $0x368] sm:$0xff]
    %v274 = vld [vmem:[%s2 + $0x370] sm:$0xff]
    %v275 = vld [vmem:[%s2 + $0x378] sm:$0xff]
    %v276 = vld [vmem:[%s2 + $0x380] sm:$0xff]
    %v277 = vld [vmem:[%s2 + $0x388] sm:$0xff]
    %v278 = vld [vmem:[%s2 + $0x390] sm:$0xff]
    %v279 = vld [vmem:[%s2 + $0x398] sm:$0xff]
    %v280 = vld [vmem:[%s2 + $0x3a0] sm:$0xff]
    %v281 = vld [vmem:[%s2 + $0x3a8] sm:$0xff]
    %v282 = vld [vmem:[%s2 + $0x3b0] sm:$0xff]
    %v283 = vld [vmem:[%s2 + $0x3b8] sm:$0xff]
    %v284 = vld [vmem:[%s2 + $0x3c0] sm:$0xff]
    %v285 = vld [vmem:[%s2 + $0x3c8] sm:$0xff]
    %v286 = vld [vmem:[%s2 + $0x3d0] sm:$0xff]
    %v287 = vld [vmem:[%s2 + $0x3d8] sm:$0xff]
    %v288 = vld [vmem:[%s2 + $0x3e0] sm:$0xff]
    %v289 = vld [vmem:[%s2 + $0x3e8] sm:$0xff]
    %v290 = vld [vmem:[%s2 + $0x3f0] sm:$0xff]
    %v291 = vld [vmem:[%s2 + $0x3f8] sm:$0xff]
    %v292 = vld [vmem:[%s2 + $0x400] sm:$0xff]
    %v293 = vld [vmem:[%s2 + $0x408] sm:$0xff]
    %v294 = vld [vmem:[%s2 + $0x410] sm:$0xff]
    %v295 = vld [vmem:[%s2 + $0x418] sm:$0xff]
    %v296 = vld [vmem:[%s2 + $0x420] sm:$0xff]
    %v297 = vld [vmem:[%s2 + $0x428] sm:$0xff]
    %v298 = vld [vmem:[%s2 + $0x430] sm:$0xff]
    %v299 = vld [vmem:[%s2 + $0x438] sm:$0xff]
    %v300 = vld [vmem:[%s2 + $0x440] sm:$0xff]
    %v301 = vld [vmem:[%s2 + $0x448] sm:$0xff]
    %v302 = vld [vmem:[%s2 + $0x450] sm:$0xff]
    %v303 = vld [vmem:[%s2 + $0x458] sm:$0xff]
    %v304 = vld [vmem:[%s2 + $0x460] sm:$0xff]
    %v305 = vld [vmem:[%s2 + $0x468] sm:$0xff]
    %v306 = vld [vmem:[%s2 + $0x470] sm:$0xff]
    %v307 = vld [vmem:[%s2 + $0x478] sm:$0xff]
    %v308 = vld [vmem:[%s2 + $0x480] sm:$0xff]
    %v309 = vld [vmem:[%s2 + $0x488] sm:$0xff]
    %v310 = vld [vmem:[%s2 + $0x490] sm:$0xff]
    %v311 = vld [vmem:[%s2 + $0x498] sm:$0xff]
    %v312 = vld [vmem:[%s2 + $0x4a0] sm:$0xff]
    %v313 = vld [vmem:[%s2 + $0x4a8] sm:$0xff]
    %v314 = vld [vmem:[%s2 + $0x4b0] sm:$0xff]
    %v315 = vld [vmem:[%s2 + $0x4b8] sm:$0xff]
    %v316 = vld [vmem:[%s2 + $0x4c0] sm:$0xff]
    %v317 = vld [vmem:[%s2 + $0x4c8] sm:$0xff]
    %v318 = vld [vmem:[%s2 + $0x4d0] sm:$0xff]
    %v319 = vld [vmem:[%s2 + $0x4d8] sm:$0xff]
    %v320 = vld [vmem:[%s2 + $0x4e0] sm:$0xff]
    %v321 = vld [vmem:[%s2 + $0x4e8] sm:$0xff]
    %v322 = vld [vmem:[%s2 + $0x4f0] sm:$0xff]
    %v323 = vld [vmem:[%s2 + $0x4f8] sm:$0xff]
    %v324 = vld [vmem:[%s2 + $0x500] sm:$0xff]
    %v325 = vld [vmem:[%s2 + $0x508] sm:$0xff]
    %v326 = vld [vmem:[%s2 + $0x510] sm:$0xff]
    %v327 = vld [vmem:[%s2 + $0x518] sm:$0xff]
    %v328 = vld [vmem:[%s2 + $0x520] sm:$0xff]
    %v329 = vld [vmem:[%s2 + $0x528] sm:$0xff]
    %v330 = vld [vmem:[%s2 + $0x530] sm:$0xff]
    %v331 = vld [vmem:[%s2 + $0x538] sm:$0xff]
    %v332 = vld [vmem:[%s2 + $0x540] sm:$0xff]
    %v333 = vld [vmem:[%s2 + $0x548] sm:$0xff]
    %v334 = vld [vmem:[%s2 + $0x550] sm:$0xff]
    %v335 = vld [vmem:[%s2 + $0x558] sm:$0xff]
    %v336 = vld [vmem:[%s2 + $0x560] sm:$0xff]
    %v337 = vld [vmem:[%s2 + $0x568] sm:$0xff]
    %v338 = vld [vmem:[%s2 + $0x570] sm:$0xff]
    %v339 = vld [vmem:[%s2 + $0x578] sm:$0xff]
    %v340 = vld [vmem:[%s2 + $0x580] sm:$0xff]
    %v341 = vld [vmem:[%s2 + $0x588] sm:$0xff]
    %v342 = vld [vmem:[%s2 + $0x590] sm:$0xff]
    %v343 = vld [vmem:[%s2 + $0x598] sm:$0xff]
    %v344 = vld [vmem:[%s2 + $0x5a0] sm:$0xff]
    %v345 = vld [vmem:[%s2 + $0x5a8] sm:$0xff]
    %v346 = vld [vmem:[%s2 + $0x5b0] sm:$0xff]
    %v347 = vld [vmem:[%s2 + $0x5b8] sm:$0xff]
    %v348 = vld [vmem:[%s2 + $0x5c0] sm:$0xff]
    %v349 = vld [vmem:[%s2 + $0x5c8] sm:$0xff]
    %v350 = vld [vmem:[%s2 + $0x5d0] sm:$0xff]
    %v351 = vld [vmem:[%s2 + $0x5d8] sm:$0xff]
    %v352 = vld [vmem:[%s2 + $0x5e0] sm:$0xff]
    %v353 = vld [vmem:[%s2 + $0x5e8] sm:$0xff]
    %v354 = vld [vmem:[%s2 + $0x5f0] sm:$0xff]
    %v355 = vld [vmem:[%s2 + $0x5f8] sm:$0xff]
    %v356 = vld [vmem:[%s2 + $0x600] sm:$0xff]
    %v357 = vld [vmem:[%s2 + $0x608] sm:$0xff]
    %v358 = vld [vmem:[%s2 + $0x610] sm:$0xff]
    %v359 = vld [vmem:[%s2 + $0x618] sm:$0xff]
    %v360 = vld [vmem:[%s2 + $0x620] sm:$0xff]
    %v361 = vld [vmem:[%s2 + $0x628] sm:$0xff]
    %v362 = vld [vmem:[%s2 + $0x630] sm:$0xff]
    %v363 = vld [vmem:[%s2 + $0x638] sm:$0xff]
    %v364 = vld [vmem:[%s2 + $0x640] sm:$0xff]
    %v365 = vld [vmem:[%s2 + $0x648] sm:$0xff]
    %v366 = vld [vmem:[%s2 + $0x650] sm:$0xff]
    %v367 = vld [vmem:[%s2 + $0x658] sm:$0xff]
    %v368 = vld [vmem:[%s2 + $0x660] sm:$0xff]
    %v369 = vld [vmem:[%s2 + $0x668] sm:$0xff]
    %v370 = vld [vmem:[%s2 + $0x670] sm:$0xff]
    %v371 = vld [vmem:[%s2 + $0x678] sm:$0xff]
    %v372 = vld [vmem:[%s2 + $0x680] sm:$0xff]
    %v373 = vld [vmem:[%s2 + $0x688] sm:$0xff]
    %v374 = vld [vmem:[%s2 + $0x690] sm:$0xff]
    %v375 = vld [vmem:[%s2 + $0x698] sm:$0xff]
    %v376 = vld [vmem:[%s2 + $0x6a0] sm:$0xff]
    %v377 = vld [vmem:[%s2 + $0x6a8] sm:$0xff]
    %v378 = vld [vmem:[%s2 + $0x6b0] sm:$0xff]
    %v379 = vld [vmem:[%s2 + $0x6b8] sm:$0xff]
    %v380 = vld [vmem:[%s2 + $0x6c0] sm:$0xff]
    %v381 = vld [vmem:[%s2 + $0x6c8] sm:$0xff]
    %v382 = vld [vmem:[%s2 + $0x6d0] sm:$0xff]
    %v383 = vld [vmem:[%s2 + $0x6d8] sm:$0xff]
    %v384 = vld [vmem:[%s2 + $0x6e0] sm:$0xff]
    %v385 = vld [vmem:[%s2 + $0x6e8] sm:$0xff]
    %v386 = vld [vmem:[%s2 + $0x6f0] sm:$0xff]
    %v387 = vld [vmem:[%s2 + $0x6f8] sm:$0xff]
    %v388 = vld [vmem:[%s2 + $0x700] sm:$0xff]
    %v389 = vld [vmem:[%s2 + $0x708] sm:$0xff]
    %v390 = vld [vmem:[%s2 + $0x710] sm:$0xff]
    %v391 = vld [vmem:[%s2 + $0x718] sm:$0xff]
    %v392 = vld [vmem:[%s2 + $0x720] sm:$0xff]
    %v393 = vld [vmem:[%s2 + $0x728] sm:$0xff]
    %v394 = vld [vmem:[%s2 + $0x730] sm:$0xff]
    %v395 = vld [vmem:[%s2 + $0x738] sm:$0xff]
    %v396 = vld [vmem:[%s2 + $0x740] sm:$0xff]
    %v397 = vld [vmem:[%s2 + $0x748] sm:$0xff]
    %v398 = vld [vmem:[%s2 + $0x750] sm:$0xff]
    %v399 = vld [vmem:[%s2 + $0x758] sm:$0xff]
    %v400 = vld [vmem:[%s2 + $0x760] sm:$0xff]
    %v401 = vld [vmem:[%s2 + $0x768] sm:$0xff]
    %v402 = vld [vmem:[%s2 + $0x770] sm:$0xff]
    %v403 = vld [vmem:[%s2 + $0x778] sm:$0xff]
    %v404 = vld [vmem:[%s2 + $0x780] sm:$0xff]
    %v405 = vld [vmem:[%s2 + $0x788] sm:$0xff]
    %v406 = vld [vmem:[%s2 + $0x790] sm:$0xff]
    %v407 = vld [vmem:[%s2 + $0x798] sm:$0xff]
    %v408 = vld [vmem:[%s2 + $0x7a0] sm:$0xff]
    %v409 = vld [vmem:[%s2 + $0x7a8] sm:$0xff]
    %v410 = vld [vmem:[%s2 + $0x7b0] sm:$0xff]
    %v411 = vld [vmem:[%s2 + $0x7b8] sm:$0xff]
    %v412 = vld [vmem:[%s2 + $0x7c0] sm:$0xff]
    %v413 = vld [vmem:[%s2 + $0x7c8] sm:$0xff]
    %v414 = vld [vmem:[%s2 + $0x7d0] sm:$0xff]
    %v415 = vld [vmem:[%s2 + $0x7d8] sm:$0xff]
    %v416 = vld [vmem:[%s2 + $0x7e0] sm:$0xff]
    %v417 = vld [vmem:[%s2 + $0x7e8] sm:$0xff]
    %v418 = vld [vmem:[%s2 + $0x7f0] sm:$0xff]
    %v419 = vld [vmem:[%s2 + $0x7f8] sm:$0xff]
    %v420 = vld [vmem:[%s2 + $0x800] sm:$0xff]
    %v421 = vld [vmem:[%s2 + $0x808] sm:$0xff]
    %v422 = vld [vmem:[%s2 + $0x810] sm:$0xff]
    %v423 = vld [vmem:[%s2 + $0x818] sm:$0xff]
    %v424 = vld [vmem:[%s2 + $0x820] sm:$0xff]
    %v425 = vld [vmem:[%s2 + $0x828] sm:$0xff]
    %v426 = vld [vmem:[%s2 + $0x830] sm:$0xff]
    %v427 = vld [vmem:[%s2 + $0x838] sm:$0xff]
    %v428 = vld [vmem:[%s2 + $0x840] sm:$0xff]
    %v429 = vld [vmem:[%s2 + $0x848] sm:$0xff]
    %v430 = vld [vmem:[%s2 + $0x850] sm:$0xff]
    %v431 = vld [vmem:[%s2 + $0x858] sm:$0xff]
    %v432 = vld [vmem:[%s2 + $0x860] sm:$0xff]
    %v433 = vld [vmem:[%s2 + $0x868] sm:$0xff]
    %v434 = vld [vmem:[%s2 + $0x870] sm:$0xff]
    %v435 = vld [vmem:[%s2 + $0x878] sm:$0xff]
    %v436 = vld [vmem:[%s2 + $0x880] sm:$0xff]
    %v437 = vld [vmem:[%s2 + $0x888] sm:$0xff]
    %v438 = vld [vmem:[%s2 + $0x890] sm:$0xff]
    %v439 = vld [vmem:[%s2 + $0x898] sm:$0xff]
    %v440 = vld [vmem:[%s2 + $0x8a0] sm:$0xff]
    %v441 = vld [vmem:[%s2 + $0x8a8] sm:$0xff]
    %v442 = vld [vmem:[%s2 + $0x8b0] sm:$0xff]
    %v443 = vld [vmem:[%s2 + $0x8b8] sm:$0xff]
    %v444 = vld [vmem:[%s2 + $0x8c0] sm:$0xff]
    %v445 = vld [vmem:[%s2 + $0x8c8] sm:$0xff]
    %v446 = vld [vmem:[%s2 + $0x8d0] sm:$0xff]
    %v447 = vld [vmem:[%s2 + $0x8d8] sm:$0xff]
    %v448 = vld [vmem:[%s2 + $0x8e0] sm:$0xff]
    %v449 = vld [vmem:[%s2 + $0x8e8] sm:$0xff]
    %v450 = vld [vmem:[%s2 + $0x8f0] sm:$0xff]
    %v451 = vld [vmem:[%s2 + $0x8f8] sm:$0xff]
    %v452 = vld [vmem:[%s2 + $0x900] sm:$0xff]
    %v453 = vld [vmem:[%s2 + $0x908] sm:$0xff]
    %v454 = vld [vmem:[%s2 + $0x910] sm:$0xff]
    %v455 = vld [vmem:[%s2 + $0x918] sm:$0xff]
    %v456 = vld [vmem:[%s2 + $0x920] sm:$0xff]
    %v457 = vld [vmem:[%s2 + $0x928] sm:$0xff]
    %v458 = vld [vmem:[%s2 + $0x930] sm:$0xff]
    %v459 = vld [vmem:[%s2 + $0x938] sm:$0xff]
    %v460 = vld [vmem:[%s2 + $0x940] sm:$0xff]
    %v461 = vld [vmem:[%s2 + $0x948] sm:$0xff]
    %v462 = vld [vmem:[%s2 + $0x950] sm:$0xff]
    %v463 = vld [vmem:[%s2 + $0x958] sm:$0xff]
    %v464 = vld [vmem:[%s2 + $0x960] sm:$0xff]
    %v465 = vld [vmem:[%s2 + $0x968] sm:$0xff]
    %v466 = vld [vmem:[%s2 + $0x970] sm:$0xff]
    %v467 = vld [vmem:[%s2 + $0x978] sm:$0xff]
    %v468 = vld [vmem:[%s2 + $0x980] sm:$0xff]
    %v469 = vld [vmem:[%s2 + $0x988] sm:$0xff]
    %v470 = vld [vmem:[%s2 + $0x990] sm:$0xff]
    %v471 = vld [vmem:[%s2 + $0x998] sm:$0xff]
    %v472 = vld [vmem:[%s2 + $0x9a0] sm:$0xff]
    %v473 = vld [vmem:[%s2 + $0x9a8] sm:$0xff]
    %v474 = vld [vmem:[%s2 + $0x9b0] sm:$0xff]
    %v475 = vld [vmem:[%s2 + $0x9b8] sm:$0xff]
    %v476 = vld [vmem:[%s2 + $0x9c0] sm:$0xff]
    %v477 = vld [vmem:[%s2 + $0x9c8] sm:$0xff]
    %v478 = vld [vmem:[%s2 + $0x9d0] sm:$0xff]
    %v479 = vld [vmem:[%s2 + $0x9d8] sm:$0xff]
    %v480 = vld [vmem:[%s2 + $0x9e0] sm:$0xff]
    %v481 = vld [vmem:[%s2 + $0x9e8] sm:$0xff]
    %v482 = vld [vmem:[%s2 + $0x9f0] sm:$0xff]
    %v483 = vld [vmem:[%s2 + $0x9f8] sm:$0xff]
    %v484 = vld [vmem:[%s2 + $0xa00] sm:$0xff]
    %v485 = vld [vmem:[%s2 + $0xa08] sm:$0xff]
    %v486 = vld [vmem:[%s2 + $0xa10] sm:$0xff]
    %v487 = vld [vmem:[%s2 + $0xa18] sm:$0xff]
    %v488 = vld [vmem:[%s2 + $0xa20] sm:$0xff]
    %v489 = vld [vmem:[%s2 + $0xa28] sm:$0xff]
    %v490 = vld [vmem:[%s2 + $0xa30] sm:$0xff]
    %v491 = vld [vmem:[%s2 + $0xa38] sm:$0xff]
    %v492 = vld [vmem:[%s2 + $0xa40] sm:$0xff]
    %v493 = vld [vmem:[%s2 + $0xa48] sm:$0xff]
    %v494 = vld [vmem:[%s2 + $0xa50] sm:$0xff]
    %v495 = vld [vmem:[%s2 + $0xa58] sm:$0xff]
    %v496 = vld [vmem:[%s2 + $0xa60] sm:$0xff]
    %v497 = vld [vmem:[%s2 + $0xa68] sm:$0xff]
    %v498 = vld [vmem:[%s2 + $0xa70] sm:$0xff]
    %v499 = vld [vmem:[%s2 + $0xa78] sm:$0xff]
    %v500 = vld [vmem:[%s2 + $0xa80] sm:$0xff]
    %v501 = vld [vmem:[%s2 + $0xa88] sm:$0xff]
    %v502 = vld [vmem:[%s2 + $0xa90] sm:$0xff]
    %v503 = vld [vmem:[%s2 + $0xa98] sm:$0xff]
    %v504 = vld [vmem:[%s2 + $0xaa0] sm:$0xff]
    %v505 = vld [vmem:[%s2 + $0xaa8] sm:$0xff]
    %v506 = vld [vmem:[%s2 + $0xab0] sm:$0xff]
    %v507 = vld [vmem:[%s2 + $0xab8] sm:$0xff]
    %v508 = vld [vmem:[%s2 + $0xac0] sm:$0xff]
    %v509 = vld [vmem:[%s2 + $0xac8] sm:$0xff]
    %v510 = vld [vmem:[%s2 + $0xad0] sm:$0xff]
    %v511 = vld [vmem:[%s2 + $0xad8] sm:$0xff]
    %v512 = vld [vmem:[%s2 + $0xae0] sm:$0xff]
    %v513 = vld [vmem:[%s2 + $0xae8] sm:$0xff]
    %v514 = vld [vmem:[%s2 + $0xaf0] sm:$0xff]
    %v515 = vld [vmem:[%s2 + $0xaf8] sm:$0xff]
    %v516 = vld [vmem:[%s2 + $0xb00] sm:$0xff]
    %v517 = vld [vmem:[%s2 + $0xb08] sm:$0xff]
    %v518 = vld [vmem:[%s2 + $0xb10] sm:$0xff]
    %v519 = vld [vmem:[%s2 + $0xb18] sm:$0xff]
    %v520 = vld [vmem:[%s2 + $0xb20] sm:$0xff]
    %v521 = vld [vmem:[%s2 + $0xb28] sm:$0xff]
    %v522 = vld [vmem:[%s2 + $0xb30] sm:$0xff]
    %v523 = vld [vmem:[%s2 + $0xb38] sm:$0xff]
    %v524 = vld [vmem:[%s2 + $0xb40] sm:$0xff]
    %v525 = vld [vmem:[%s2 + $0xb48] sm:$0xff]
    %v526 = vld [vmem:[%s2 + $0xb50] sm:$0xff]
    %v527 = vld [vmem:[%s2 + $0xb58] sm:$0xff]
    %v528 = vld [vmem:[%s2 + $0xb60] sm:$0xff]
    %v529 = vld [vmem:[%s2 + $0xb68] sm:$0xff]
    %v530 = vld [vmem:[%s2 + $0xb70] sm:$0xff]
    %v531 = vld [vmem:[%s2 + $0xb78] sm:$0xff]
    %v532 = vld [vmem:[%s2 + $0xb80] sm:$0xff]
    %v533 = vld [vmem:[%s2 + $0xb88] sm:$0xff]
    %v534 = vld [vmem:[%s2 + $0xb90] sm:$0xff]
    %v535 = vld [vmem:[%s2 + $0xb98] sm:$0xff]
    %v536 = vld [vmem:[%s2 + $0xba0] sm:$0xff]
    %v537 = vld [vmem:[%s2 + $0xba8] sm:$0xff]
    %v538 = vld [vmem:[%s2 + $0xbb0] sm:$0xff]
    %v539 = vld [vmem:[%s2 + $0xbb8] sm:$0xff]
    %v540 = vld [vmem:[%s2 + $0xbc0] sm:$0xff]
    %v541 = vld [vmem:[%s2 + $0xbc8] sm:$0xff]
    %v542 = vld [vmem:[%s2 + $0xbd0] sm:$0xff]
    %v543 = vld [vmem:[%s2 + $0xbd8] sm:$0xff]
    %v544 = vld [vmem:[%s2 + $0xbe0] sm:$0xff]
    %v545 = vld [vmem:[%s2 + $0xbe8] sm:$0xff]
    %v546 = vld [vmem:[%s2 + $0xbf0] sm:$0xff]
    %v547 = vld [vmem:[%s2 + $0xbf8] sm:$0xff]
    %v548 = vld [vmem:[%s2 + $0xc00] sm:$0xff]
    %v549 = vld [vmem:[%s2 + $0xc08] sm:$0xff]
    %v550 = vld [vmem:[%s2 + $0xc10] sm:$0xff]
    %v551 = vld [vmem:[%s2 + $0xc18] sm:$0xff]
    %v552 = vld [vmem:[%s2 + $0xc20] sm:$0xff]
    %v553 = vld [vmem:[%s2 + $0xc28] sm:$0xff]
    %v554 = vld [vmem:[%s2 + $0xc30] sm:$0xff]
    %v555 = vld [vmem:[%s2 + $0xc38] sm:$0xff]
    %v556 = vld [vmem:[%s2 + $0xc40] sm:$0xff]
    %v557 = vld [vmem:[%s2 + $0xc48] sm:$0xff]
    %v558 = vld [vmem:[%s2 + $0xc50] sm:$0xff]
    %v559 = vld [vmem:[%s2 + $0xc58] sm:$0xff]
    %v560 = vld [vmem:[%s2 + $0xc60] sm:$0xff]
    %v561 = vld [vmem:[%s2 + $0xc68] sm:$0xff]
    %v562 = vld [vmem:[%s2 + $0xc70] sm:$0xff]
    %v563 = vld [vmem:[%s2 + $0xc78] sm:$0xff]
    %v564 = vld [vmem:[%s2 + $0xc80] sm:$0xff]
    %v565 = vld [vmem:[%s2 + $0xc88] sm:$0xff]
    %v566 = vld [vmem:[%s2 + $0xc90] sm:$0xff]
    %v567 = vld [vmem:[%s2 + $0xc98] sm:$0xff]
    %v568 = vld [vmem:[%s2 + $0xca0] sm:$0xff]
    %v569 = vld [vmem:[%s2 + $0xca8] sm:$0xff]
    %v570 = vld [vmem:[%s2 + $0xcb0] sm:$0xff]
    %v571 = vld [vmem:[%s2 + $0xcb8] sm:$0xff]
    %v572 = vld [vmem:[%s2 + $0xcc0] sm:$0xff]
    %v573 = vld [vmem:[%s2 + $0xcc8] sm:$0xff]
    %v574 = vld [vmem:[%s2 + $0xcd0] sm:$0xff]
    %v575 = vld [vmem:[%s2 + $0xcd8] sm:$0xff]
    %v576 = vld [vmem:[%s2 + $0xce0] sm:$0xff]
    %v577 = vld [vmem:[%s2 + $0xce8] sm:$0xff]
    %v578 = vld [vmem:[%s2 + $0xcf0] sm:$0xff]
    %v579 = vld [vmem:[%s2 + $0xcf8] sm:$0xff]
    %v580 = vld [vmem:[%s2 + $0xd00] sm:$0xff]
    %v581 = vld [vmem:[%s2 + $0xd08] sm:$0xff]
    %v582 = vld [vmem:[%s2 + $0xd10] sm:$0xff]
    %v583 = vld [vmem:[%s2 + $0xd18] sm:$0xff]
    %v584 = vpack.c.bf16 %v171, %v164
    %v585 = vpack.c.bf16 %v172, %v165
    %v586 = vpack.c.bf16 %v173, %v166
    %v587 = vpack.c.bf16 %v174, %v167
    %v588 = vpack.c.bf16 %v175, %v168
    %v589 = vpack.c.bf16 %v176, %v169
    %v590 = vpack.c.bf16 %v177, %v170
    %v591 = vpack.c.bf16 %v185, %v178
    %v592 = vpack.c.bf16 %v186, %v179
    %v593 = vpack.c.bf16 %v187, %v180
    %v594 = vpack.c.bf16 %v188, %v181
    %v595 = vpack.c.bf16 %v189, %v182
    %v596 = vpack.c.bf16 %v190, %v183
    %v597 = vpack.c.bf16 %v191, %v184
    %v598 = vpack.c.bf16 %v199, %v192
    %v599 = vpack.c.bf16 %v200, %v193
    %v600 = vpack.c.bf16 %v201, %v194
    %v601 = vpack.c.bf16 %v202, %v195
    %v602 = vpack.c.bf16 %v203, %v196
    %v603 = vpack.c.bf16 %v204, %v197
    %v604 = vpack.c.bf16 %v205, %v198
    %v605 = vpack.c.bf16 %v213, %v206
    %v606 = vpack.c.bf16 %v214, %v207
    %v607 = vpack.c.bf16 %v215, %v208
    %v608 = vpack.c.bf16 %v216, %v209
    %v609 = vpack.c.bf16 %v217, %v210
    %v610 = vpack.c.bf16 %v218, %v211
    %v611 = vpack.c.bf16 %v219, %v212
    %v612 = vpack.c.bf16 %v227, %v220
    %v613 = vpack.c.bf16 %v228, %v221
    %v614 = vpack.c.bf16 %v229, %v222
    %v615 = vpack.c.bf16 %v230, %v223
    %v616 = vpack.c.bf16 %v231, %v224
    %v617 = vpack.c.bf16 %v232, %v225
    %v618 = vpack.c.bf16 %v233, %v226
    %v619 = vpack.c.bf16 %v241, %v234
    %v620 = vpack.c.bf16 %v242, %v235
    %v621 = vpack.c.bf16 %v243, %v236
    %v622 = vpack.c.bf16 %v244, %v237
    %v623 = vpack.c.bf16 %v245, %v238
    %v624 = vpack.c.bf16 %v246, %v239
    %v625 = vpack.c.bf16 %v247, %v240
    %v626 = vpack.c.bf16 %v255, %v248
    %v627 = vpack.c.bf16 %v256, %v249
    %v628 = vpack.c.bf16 %v257, %v250
    %v629 = vpack.c.bf16 %v258, %v251
    %v630 = vpack.c.bf16 %v259, %v252
    %v631 = vpack.c.bf16 %v260, %v253
    %v632 = vpack.c.bf16 %v261, %v254
    %v633 = vpack.c.bf16 %v269, %v262
    %v634 = vpack.c.bf16 %v270, %v263
    %v635 = vpack.c.bf16 %v271, %v264
    %v636 = vpack.c.bf16 %v272, %v265
    %v637 = vpack.c.bf16 %v273, %v266
    %v638 = vpack.c.bf16 %v274, %v267
    %v639 = vpack.c.bf16 %v275, %v268
    %v640 = vpack.c.bf16 %v283, %v276
    %v641 = vpack.c.bf16 %v284, %v277
    %v642 = vpack.c.bf16 %v285, %v278
    %v643 = vpack.c.bf16 %v286, %v279
    %v644 = vpack.c.bf16 %v287, %v280
    %v645 = vpack.c.bf16 %v288, %v281
    %v646 = vpack.c.bf16 %v289, %v282
    %v647 = vpack.c.bf16 %v297, %v290
    %v648 = vpack.c.bf16 %v298, %v291
    %v649 = vpack.c.bf16 %v299, %v292
    %v650 = vpack.c.bf16 %v300, %v293
    %v651 = vpack.c.bf16 %v301, %v294
    %v652 = vpack.c.bf16 %v302, %v295
    %v653 = vpack.c.bf16 %v303, %v296
    %v654 = vpack.c.bf16 %v311, %v304
    %v655 = vpack.c.bf16 %v312, %v305
    %v656 = vpack.c.bf16 %v313, %v306
    %v657 = vpack.c.bf16 %v314, %v307
    %v658 = vpack.c.bf16 %v315, %v308
    %v659 = vpack.c.bf16 %v316, %v309
    %v660 = vpack.c.bf16 %v317, %v310
    %v661 = vpack.c.bf16 %v325, %v318
    %v662 = vpack.c.bf16 %v326, %v319
    %v663 = vpack.c.bf16 %v327, %v320
    %v664 = vpack.c.bf16 %v328, %v321
    %v665 = vpack.c.bf16 %v329, %v322
    %v666 = vpack.c.bf16 %v330, %v323
    %v667 = vpack.c.bf16 %v331, %v324
    %v668 = vpack.c.bf16 %v339, %v332
    %v669 = vpack.c.bf16 %v340, %v333
    %v670 = vpack.c.bf16 %v341, %v334
    %v671 = vpack.c.bf16 %v342, %v335
    %v672 = vpack.c.bf16 %v343, %v336
    %v673 = vpack.c.bf16 %v344, %v337
    %v674 = vpack.c.bf16 %v345, %v338
    %v675 = vpack.c.bf16 %v353, %v346
    %v676 = vpack.c.bf16 %v354, %v347
    %v677 = vpack.c.bf16 %v355, %v348
    %v678 = vpack.c.bf16 %v356, %v349
    %v679 = vpack.c.bf16 %v357, %v350
    %v680 = vpack.c.bf16 %v358, %v351
    %v681 = vpack.c.bf16 %v359, %v352
    %v682 = vpack.c.bf16 %v367, %v360
    %v683 = vpack.c.bf16 %v368, %v361
    %v684 = vpack.c.bf16 %v369, %v362
    %v685 = vpack.c.bf16 %v370, %v363
    %v686 = vpack.c.bf16 %v371, %v364
    %v687 = vpack.c.bf16 %v372, %v365
    %v688 = vpack.c.bf16 %v373, %v366
    %v689 = vpack.c.bf16 %v381, %v374
    %v690 = vpack.c.bf16 %v382, %v375
    %v691 = vpack.c.bf16 %v383, %v376
    %v692 = vpack.c.bf16 %v384, %v377
    %v693 = vpack.c.bf16 %v385, %v378
    %v694 = vpack.c.bf16 %v386, %v379
    %v695 = vpack.c.bf16 %v387, %v380
    %v696 = vpack.c.bf16 %v395, %v388
    %v697 = vpack.c.bf16 %v396, %v389
    %v698 = vpack.c.bf16 %v397, %v390
    %v699 = vpack.c.bf16 %v398, %v391
    %v700 = vpack.c.bf16 %v399, %v392
    %v701 = vpack.c.bf16 %v400, %v393
    %v702 = vpack.c.bf16 %v401, %v394
    %v703 = vpack.c.bf16 %v409, %v402
    %v704 = vpack.c.bf16 %v410, %v403
    %v705 = vpack.c.bf16 %v411, %v404
    %v706 = vpack.c.bf16 %v412, %v405
    %v707 = vpack.c.bf16 %v413, %v406
    %v708 = vpack.c.bf16 %v414, %v407
    %v709 = vpack.c.bf16 %v415, %v408
    %v710 = vpack.c.bf16 %v423, %v416
    %v711 = vpack.c.bf16 %v424, %v417
    %v712 = vpack.c.bf16 %v425, %v418
    %v713 = vpack.c.bf16 %v426, %v419
    %v714 = vpack.c.bf16 %v427, %v420
    %v715 = vpack.c.bf16 %v428, %v421
    %v716 = vpack.c.bf16 %v429, %v422
    %v717 = vpack.c.bf16 %v437, %v430
    %v718 = vpack.c.bf16 %v438, %v431
    %v719 = vpack.c.bf16 %v439, %v432
    %v720 = vpack.c.bf16 %v440, %v433
    %v721 = vpack.c.bf16 %v441, %v434
    %v722 = vpack.c.bf16 %v442, %v435
    %v723 = vpack.c.bf16 %v443, %v436
    %v724 = vpack.c.bf16 %v451, %v444
    %v725 = vpack.c.bf16 %v452, %v445
    %v726 = vpack.c.bf16 %v453, %v446
    %v727 = vpack.c.bf16 %v454, %v447
    %v728 = vpack.c.bf16 %v455, %v448
    %v729 = vpack.c.bf16 %v456, %v449
    %v730 = vpack.c.bf16 %v457, %v450
    %v731 = vpack.c.bf16 %v465, %v458
    %v732 = vpack.c.bf16 %v466, %v459
    %v733 = vpack.c.bf16 %v467, %v460
    %v734 = vpack.c.bf16 %v468, %v461
    %v735 = vpack.c.bf16 %v469, %v462
    %v736 = vpack.c.bf16 %v470, %v463
    %v737 = vpack.c.bf16 %v471, %v464
    %v738 = vpack.c.bf16 %v479, %v472
    %v739 = vpack.c.bf16 %v480, %v473
    %v740 = vpack.c.bf16 %v481, %v474
    %v741 = vpack.c.bf16 %v482, %v475
    %v742 = vpack.c.bf16 %v483, %v476
    %v743 = vpack.c.bf16 %v484, %v477
    %v744 = vpack.c.bf16 %v485, %v478
    %v745 = vpack.c.bf16 %v493, %v486
    %v746 = vpack.c.bf16 %v494, %v487
    %v747 = vpack.c.bf16 %v495, %v488
    %v748 = vpack.c.bf16 %v496, %v489
    %v749 = vpack.c.bf16 %v497, %v490
    %v750 = vpack.c.bf16 %v498, %v491
    %v751 = vpack.c.bf16 %v499, %v492
    %v752 = vpack.c.bf16 %v507, %v500
    %v753 = vpack.c.bf16 %v508, %v501
    %v754 = vpack.c.bf16 %v509, %v502
    %v755 = vpack.c.bf16 %v510, %v503
    %v756 = vpack.c.bf16 %v511, %v504
    %v757 = vpack.c.bf16 %v512, %v505
    %v758 = vpack.c.bf16 %v513, %v506
    %v759 = vpack.c.bf16 %v521, %v514
    %v760 = vpack.c.bf16 %v522, %v515
    %v761 = vpack.c.bf16 %v523, %v516
    %v762 = vpack.c.bf16 %v524, %v517
    %v763 = vpack.c.bf16 %v525, %v518
    %v764 = vpack.c.bf16 %v526, %v519
    %v765 = vpack.c.bf16 %v527, %v520
    %v766 = vpack.c.bf16 %v535, %v528
    %v767 = vpack.c.bf16 %v536, %v529
    %v768 = vpack.c.bf16 %v537, %v530
    %v769 = vpack.c.bf16 %v538, %v531
    %v770 = vpack.c.bf16 %v539, %v532
    %v771 = vpack.c.bf16 %v540, %v533
    %v772 = vpack.c.bf16 %v541, %v534
    %v773 = vpack.c.bf16 %v549, %v542
    %v774 = vpack.c.bf16 %v550, %v543
    %v775 = vpack.c.bf16 %v551, %v544
    %v776 = vpack.c.bf16 %v552, %v545
    %v777 = vpack.c.bf16 %v553, %v546
    %v778 = vpack.c.bf16 %v554, %v547
    %v779 = vpack.c.bf16 %v555, %v548
    %v780 = vpack.c.bf16 %v563, %v556
    %v781 = vpack.c.bf16 %v564, %v557
    %v782 = vpack.c.bf16 %v565, %v558
    %v783 = vpack.c.bf16 %v566, %v559
    %v784 = vpack.c.bf16 %v567, %v560
    %v785 = vpack.c.bf16 %v568, %v561
    %v786 = vpack.c.bf16 %v569, %v562
    %v787 = vpack.c.bf16 %v577, %v570
    %v788 = vpack.c.bf16 %v578, %v571
    %v789 = vpack.c.bf16 %v579, %v572
    %v790 = vpack.c.bf16 %v580, %v573
    %v791 = vpack.c.bf16 %v581, %v574
    %v792 = vpack.c.bf16 %v582, %v575
    %v793 = vpack.c.bf16 %v583, %v576
    %vm794 = vcmask 785408
    %v796 = vsel %vm794, %v147, 0
    %v799 = vsel %vm794, %v151, 0
    %v802 = vsel %vm794, %v155, 0
    %v805 = vsel %vm794, %v159, 0
    %v808 = vsel %vm794, %v163, 0
    %810 = vmatprep.subr.bf16.mxu0 %v585
    %811 = vmatpush1.bf16.msra.mxu0 %v584
    %812 = vmatprep.subr.bf16.mxu0 %v592
    %813 = vmatpush1.bf16.msra.mxu0 %v591
    %814 = vmatprep.subr.bf16.mxu0 %v599
    %815 = vmatpush1.bf16.msra.mxu0 %v598
    %816 = vmatprep.subr.bf16.mxu0 %v606
    %817 = vmatpush1.bf16.msra.mxu0 %v605
    %818 = vmatprep.subr.bf16.mxu0 %v613
    %819 = vmatpush1.bf16.msra.mxu0 %v612
    %820 = vmatprep.subr.bf16.mxu0 %v620
    %821 = vmatpush1.bf16.msra.mxu0 %v619
    %822 = vmatprep.subr.bf16.mxu0 %v627
    %823 = vmatpush1.bf16.msra.mxu0 %v626
    %824 = vmatprep.subr.bf16.mxu0 %v634
    %825 = vmatpush1.bf16.msra.mxu0 %v633
    %826 = vmatprep.subr.bf16.mxu0 %v641
    %827 = vmatpush1.bf16.msra.mxu0 %v640
    %828 = vmatprep.subr.bf16.mxu0 %v648
    %829 = vmatpush1.bf16.msra.mxu0 %v647
    %830 = vmatprep.subr.bf16.mxu0 %v655
    %831 = vmatpush1.bf16.msra.mxu0 %v654
    %832 = vmatprep.subr.bf16.mxu0 %v662
    %833 = vmatpush1.bf16.msra.mxu0 %v661
    %834 = vmatprep.subr.bf16.mxu0 %v669
    %835 = vmatpush1.bf16.msra.mxu0 %v668
    %836 = vmatprep.subr.bf16.mxu0 %v676
    %837 = vmatpush1.bf16.msra.mxu0 %v675
    %838 = vmatprep.subr.bf16.mxu0 %v683
    %839 = vmatpush1.bf16.msra.mxu0 %v682
    %840 = vmatprep.subr.bf16.mxu0 %v690
    %841 = vmatpush1.bf16.msra.mxu0 %v689
    %842 = vmatprep.mubr.bf16.mxu0 %v145
    %843 = vmatmul.mubr.bf16.gmra.mrb[0].mxu0 %v144
    %v844 = vpop.f32.mrb[0].mxu0
    %v845 = vadd.f32 0.0, %v844
    %v846 = vpop.f32.mrb[0].mxu0
    %v847 = vadd.f32 0.0, %v846
    %v848 = vpop.f32.mrb[0].mxu0
    %v849 = vadd.f32 0.0, %v848
    %v850 = vpop.f32.mrb[0].mxu0
    %v851 = vadd.f32 0.0, %v850
    %852 = vmatprep.mubr.bf16.mxu0 %v149
    %853 = vmatmul.mubr.bf16.gmra.mrb[0].mxu0 %v148
    %v854 = vpop.f32.mrb[0].mxu0
    %v855 = vadd.f32 0.0, %v854
    %v856 = vpop.f32.mrb[0].mxu0
    %v857 = vadd.f32 0.0, %v856
    %v858 = vpop.f32.mrb[0].mxu0
    %v859 = vadd.f32 0.0, %v858
    %v860 = vpop.f32.mrb[0].mxu0
    %v861 = vadd.f32 0.0, %v860
    %862 = vmatprep.mubr.bf16.mxu0 %v153
    %863 = vmatmul.mubr.bf16.gmra.mrb[0].mxu0 %v152
    %v864 = vpop.f32.mrb[0].mxu0
    %v865 = vadd.f32 0.0, %v864
    %v866 = vpop.f32.mrb[0].mxu0
    %v867 = vadd.f32 0.0, %v866
    %v868 = vpop.f32.mrb[0].mxu0
    %v869 = vadd.f32 0.0, %v868
    %v870 = vpop.f32.mrb[0].mxu0
    %v871 = vadd.f32 0.0, %v870
    %872 = vmatprep.mubr.bf16.mxu0 %v157
    %873 = vmatmul.mubr.bf16.gmra.mrb[0].mxu0 %v156
    %v874 = vpop.f32.mrb[0].mxu0
    %v875 = vadd.f32 0.0, %v874
    %v876 = vpop.f32.mrb[0].mxu0
    %v877 = vadd.f32 0.0, %v876
    %v878 = vpop.f32.mrb[0].mxu0
    %v879 = vadd.f32 0.0, %v878
    %v880 = vpop.f32.mrb[0].mxu0
    %v881 = vadd.f32 0.0, %v880
    %882 = vmatprep.mubr.bf16.mxu0 %v161
    %883 = vmatmul.mubr.bf16.gmra.mrb[0].mxu0 %v160
    %v884 = vpop.f32.mrb[0].mxu0
    %v885 = vadd.f32 0.0, %v884
    %v886 = vpop.f32.mrb[0].mxu0
    %v887 = vadd.f32 0.0, %v886
    %v888 = vpop.f32.mrb[0].mxu0
    %v889 = vadd.f32 0.0, %v888
    %v890 = vpop.f32.mrb[0].mxu0
    %v891 = vadd.f32 0.0, %v890
    %892 = vdwg.mxu0
    %893 = vmatprep.subr.bf16.mxu0 %v697
    %894 = vmatpush1.bf16.msra.mxu0 %v696
    %895 = vmatprep.subr.bf16.mxu0 %v704
    %896 = vmatpush1.bf16.msra.mxu0 %v703
    %897 = vmatprep.subr.bf16.mxu0 %v711
    %898 = vmatpush1.bf16.msra.mxu0 %v710
    %899 = vmatprep.subr.bf16.mxu0 %v718
    %900 = vmatpush1.bf16.msra.mxu0 %v717
    %901 = vmatprep.subr.bf16.mxu0 %v725
    %902 = vmatpush1.bf16.msra.mxu0 %v724
    %903 = vmatprep.subr.bf16.mxu0 %v732
    %904 = vmatpush1.bf16.msra.mxu0 %v731
    %905 = vmatprep.subr.bf16.mxu0 %v739
    %906 = vmatpush1.bf16.msra.mxu0 %v738
    %907 = vmatprep.subr.bf16.mxu0 %v746
    %908 = vmatpush1.bf16.msra.mxu0 %v745
    %909 = vmatprep.subr.bf16.mxu0 %v753
    %910 = vmatpush1.bf16.msra.mxu0 %v752
    %911 = vmatprep.subr.bf16.mxu0 %v760
    %912 = vmatpush1.bf16.msra.mxu0 %v759
    %913 = vmatprep.subr.bf16.mxu0 %v767
    %914 = vmatpush1.bf16.msra.mxu0 %v766
    %915 = vmatprep.subr.bf16.mxu0 %v774
    %916 = vmatpush1.bf16.msra.mxu0 %v773
    %917 = vmatprep.subr.bf16.mxu0 %v781
    %918 = vmatpush1.bf16.msra.mxu0 %v780
    %919 = vmatprep.subr.bf16.mxu0 %v788
    %920 = vmatpush1.bf16.msra.mxu0 %v787
    %921 = vmatprep.subr.bf16.mxu0 0
    %922 = vmatpush1.bf16.msra.mxu0 0
    %923 = vmatprep.subr.bf16.mxu0 0
    %924 = vmatpush1.bf16.msra.mxu0 0
    %925 = vmatprep.mubr.bf16.mxu0 %v796
    %926 = vmatmul.mubr.bf16.gmra.mrb[0].mxu0 %v146
    %v927 = vpop.f32.mrb[0].mxu0
    %v928 = vadd.f32 %v845, %v927
    %v929 = vpop.f32.mrb[0].mxu0
    %v930 = vadd.f32 %v847, %v929
    %v931 = vpop.f32.mrb[0].mxu0
    %v932 = vadd.f32 %v849, %v931
    %v933 = vpop.f32.mrb[0].mxu0
    %v934 = vadd.f32 %v851, %v933
    %935 = vmatprep.mubr.bf16.mxu0 %v799
    %936 = vmatmul.mubr.bf16.gmra.mrb[0].mxu0 %v150
    %v937 = vpop.f32.mrb[0].mxu0
    %v938 = vadd.f32 %v855, %v937
    %v939 = vpop.f32.mrb[0].mxu0
    %v940 = vadd.f32 %v857, %v939
    %v941 = vpop.f32.mrb[0].mxu0
    %v942 = vadd.f32 %v859, %v941
    %v943 = vpop.f32.mrb[0].mxu0
    %v944 = vadd.f32 %v861, %v943
    %945 = vmatprep.mubr.bf16.mxu0 %v802
    %946 = vmatmul.mubr.bf16.gmra.mrb[0].mxu0 %v154
    %v947 = vpop.f32.mrb[0].mxu0
    %v948 = vadd.f32 %v865, %v947
    %v949 = vpop.f32.mrb[0].mxu0
    %v950 = vadd.f32 %v867, %v949
    %v951 = vpop.f32.mrb[0].mxu0
    %v952 = vadd.f32 %v869, %v951
    %v953 = vpop.f32.mrb[0].mxu0
    %v954 = vadd.f32 %v871, %v953
    %955 = vmatprep.mubr.bf16.mxu0 %v805
    %956 = vmatmul.mubr.bf16.gmra.mrb[0].mxu0 %v158
    %v957 = vpop.f32.mrb[0].mxu0
    %v958 = vadd.f32 %v875, %v957
    %v959 = vpop.f32.mrb[0].mxu0
    %v960 = vadd.f32 %v877, %v959
    %v961 = vpop.f32.mrb[0].mxu0
    %v962 = vadd.f32 %v879, %v961
    %v963 = vpop.f32.mrb[0].mxu0
    %v964 = vadd.f32 %v881, %v963
    %965 = vmatprep.mubr.bf16.mxu0 %v808
    %966 = vmatmul.mubr.bf16.gmra.mrb[0].mxu0 %v162
    %v967 = vpop.f32.mrb[0].mxu0
    %v968 = vadd.f32 %v885, %v967
    %v969 = vpop.f32.mrb[0].mxu0
    %v970 = vadd.f32 %v887, %v969
    %v971 = vpop.f32.mrb[0].mxu0
    %v972 = vadd.f32 %v889, %v971
    %v973 = vpop.f32.mrb[0].mxu0
    %v974 = vadd.f32 %v891, %v973
    %975 = vdwg.mxu0
    %976 = vmatprep.subr.bf16.mxu0 %v587
    %977 = vmatpush1.bf16.msra.mxu0 %v586
    %978 = vmatprep.subr.bf16.mxu0 %v594
    %979 = vmatpush1.bf16.msra.mxu0 %v593
    %980 = vmatprep.subr.bf16.mxu0 %v601
    %981 = vmatpush1.bf16.msra.mxu0 %v600
    %982 = vmatprep.subr.bf16.mxu0 %v608
    %983 = vmatpush1.bf16.msra.mxu0 %v607
    %984 = vmatprep.subr.bf16.mxu0 %v615
    %985 = vmatpush1.bf16.msra.mxu0 %v614
    %986 = vmatprep.subr.bf16.mxu0 %v622
    %987 = vmatpush1.bf16.msra.mxu0 %v621
    %988 = vmatprep.subr.bf16.mxu0 %v629
    %989 = vmatpush1.bf16.msra.mxu0 %v628
    %990 = vmatprep.subr.bf16.mxu0 %v636
    %991 = vmatpush1.bf16.msra.mxu0 %v635
    %992 = vmatprep.subr.bf16.mxu0 %v643
    %993 = vmatpush1.bf16.msra.mxu0 %v642
    %994 = vmatprep.subr.bf16.mxu0 %v650
    %995 = vmatpush1.bf16.msra.mxu0 %v649
    %996 = vmatprep.subr.bf16.mxu0 %v657
    %997 = vmatpush1.bf16.msra.mxu0 %v656
    %998 = vmatprep.subr.bf16.mxu0 %v664
    %999 = vmatpush1.bf16.msra.mxu0 %v663
    %1000 = vmatprep.subr.bf16.mxu0 %v671
    %1001 = vmatpush1.bf16.msra.mxu0 %v670
    %1002 = vmatprep.subr.bf16.mxu0 %v678
    %1003 = vmatpush1.bf16.msra.mxu0 %v677
    %1004 = vmatprep.subr.bf16.mxu0 %v685
    %1005 = vmatpush1.bf16.msra.mxu0 %v684
    %1006 = vmatprep.subr.bf16.mxu0 %v692
    %1007 = vmatpush1.bf16.msra.mxu0 %v691
    %1008 = vmatprep.mubr.bf16.mxu0 %v145
    %1009 = vmatmul.mubr.bf16.gmra.mrb[0].mxu0 %v144
    %v1010 = vpop.f32.mrb[0].mxu0
    %v1011 = vadd.f32 0.0, %v1010
    %v1012 = vpop.f32.mrb[0].mxu0
    %v1013 = vadd.f32 0.0, %v1012
    %v1014 = vpop.f32.mrb[0].mxu0
    %v1015 = vadd.f32 0.0, %v1014
    %v1016 = vpop.f32.mrb[0].mxu0
    %v1017 = vadd.f32 0.0, %v1016
    %1018 = vmatprep.mubr.bf16.mxu0 %v149
    %1019 = vmatmul.mubr.bf16.gmra.mrb[0].mxu0 %v148
    %v1020 = vpop.f32.mrb[0].mxu0
    %v1021 = vadd.f32 0.0, %v1020
    %v1022 = vpop.f32.mrb[0].mxu0
    %v1023 = vadd.f32 0.0, %v1022
    %v1024 = vpop.f32.mrb[0].mxu0
    %v1025 = vadd.f32 0.0, %v1024
    %v1026 = vpop.f32.mrb[0].mxu0
    %v1027 = vadd.f32 0.0, %v1026
    %1028 = vmatprep.mubr.bf16.mxu0 %v153
    %1029 = vmatmul.mubr.bf16.gmra.mrb[0].mxu0 %v152
    %v1030 = vpop.f32.mrb[0].mxu0
    %v1031 = vadd.f32 0.0, %v1030
    %v1032 = vpop.f32.mrb[0].mxu0
    %v1033 = vadd.f32 0.0, %v1032
    %v1034 = vpop.f32.mrb[0].mxu0
    %v1035 = vadd.f32 0.0, %v1034
    %v1036 = vpop.f32.mrb[0].mxu0
    %v1037 = vadd.f32 0.0, %v1036
    %1038 = vmatprep.mubr.bf16.mxu0 %v157
    %1039 = vmatmul.mubr.bf16.gmra.mrb[0].mxu0 %v156
    %v1040 = vpop.f32.mrb[0].mxu0
    %v1041 = vadd.f32 0.0, %v1040
    %v1042 = vpop.f32.mrb[0].mxu0
    %v1043 = vadd.f32 0.0, %v1042
    %v1044 = vpop.f32.mrb[0].mxu0
    %v1045 = vadd.f32 0.0, %v1044
    %v1046 = vpop.f32.mrb[0].mxu0
    %v1047 = vadd.f32 0.0, %v1046
    %1048 = vmatprep.mubr.bf16.mxu0 %v161
    %1049 = vmatmul.mubr.bf16.gmra.mrb[0].mxu0 %v160
    %v1050 = vpop.f32.mrb[0].mxu0
    %v1051 = vadd.f32 0.0, %v1050
    %v1052 = vpop.f32.mrb[0].mxu0
    %v1053 = vadd.f32 0.0, %v1052
    %v1054 = vpop.f32.mrb[0].mxu0
    %v1055 = vadd.f32 0.0, %v1054
    %v1056 = vpop.f32.mrb[0].mxu0
    %v1057 = vadd.f32 0.0, %v1056
    %1058 = vdwg.mxu0
    %1059 = vmatprep.subr.bf16.mxu0 %v699
    %1060 = vmatpush1.bf16.msra.mxu0 %v698
    %1061 = vmatprep.subr.bf16.mxu0 %v706
    %1062 = vmatpush1.bf16.msra.mxu0 %v705
    %1063 = vmatprep.subr.bf16.mxu0 %v713
    %1064 = vmatpush1.bf16.msra.mxu0 %v712
    %1065 = vmatprep.subr.bf16.mxu0 %v720
    %1066 = vmatpush1.bf16.msra.mxu0 %v719
    %1067 = vmatprep.subr.bf16.mxu0 %v727
    %1068 = vmatpush1.bf16.msra.mxu0 %v726
    %1069 = vmatprep.subr.bf16.mxu0 %v734
    %1070 = vmatpush1.bf16.msra.mxu0 %v733
    %1071 = vmatprep.subr.bf16.mxu0 %v741
    %1072 = vmatpush1.bf16.msra.mxu0 %v740
    %1073 = vmatprep.subr.bf16.mxu0 %v748
    %1074 = vmatpush1.bf16.msra.mxu0 %v747
    %1075 = vmatprep.subr.bf16.mxu0 %v755
    %1076 = vmatpush1.bf16.msra.mxu0 %v754
    %1077 = vmatprep.subr.bf16.mxu0 %v762
    %1078 = vmatpush1.bf16.msra.mxu0 %v761
    %1079 = vmatprep.subr.bf16.mxu0 %v769
    %1080 = vmatpush1.bf16.msra.mxu0 %v768
    %1081 = vmatprep.subr.bf16.mxu0 %v776
    %1082 = vmatpush1.bf16.msra.mxu0 %v775
    %1083 = vmatprep.subr.bf16.mxu0 %v783
    %1084 = vmatpush1.bf16.msra.mxu0 %v782
    %1085 = vmatprep.subr.bf16.mxu0 %v790
    %1086 = vmatpush1.bf16.msra.mxu0 %v789
    %1087 = vmatprep.subr.bf16.mxu0 0
    %1088 = vmatpush1.bf16.msra.mxu0 0
    %1089 = vmatprep.subr.bf16.mxu0 0
    %1090 = vmatpush1.bf16.msra.mxu0 0
    %1091 = vmatprep.mubr.bf16.mxu0 %v796
    %1092 = vmatmul.mubr.bf16.gmra.mrb[0].mxu0 %v146
    %v1093 = vpop.f32.mrb[0].mxu0
    %v1094 = vadd.f32 %v1011, %v1093
    %v1095 = vpop.f32.mrb[0].mxu0
    %v1096 = vadd.f32 %v1013, %v1095
    %v1097 = vpop.f32.mrb[0].mxu0
    %v1098 = vadd.f32 %v1015, %v1097
    %v1099 = vpop.f32.mrb[0].mxu0
    %v1100 = vadd.f32 %v1017, %v1099
    %1101 = vmatprep.mubr.bf16.mxu0 %v799
    %1102 = vmatmul.mubr.bf16.gmra.mrb[0].mxu0 %v150
    %v1103 = vpop.f32.mrb[0].mxu0
    %v1104 = vadd.f32 %v1021, %v1103
    %v1105 = vpop.f32.mrb[0].mxu0
    %v1106 = vadd.f32 %v1023, %v1105
    %v1107 = vpop.f32.mrb[0].mxu0
    %v1108 = vadd.f32 %v1025, %v1107
    %v1109 = vpop.f32.mrb[0].mxu0
    %v1110 = vadd.f32 %v1027, %v1109
    %1111 = vmatprep.mubr.bf16.mxu0 %v802
    %1112 = vmatmul.mubr.bf16.gmra.mrb[0].mxu0 %v154
    %v1113 = vpop.f32.mrb[0].mxu0
    %v1114 = vadd.f32 %v1031, %v1113
    %v1115 = vpop.f32.mrb[0].mxu0
    %v1116 = vadd.f32 %v1033, %v1115
    %v1117 = vpop.f32.mrb[0].mxu0
    %v1118 = vadd.f32 %v1035, %v1117
    %v1119 = vpop.f32.mrb[0].mxu0
    %v1120 = vadd.f32 %v1037, %v1119
    %1121 = vmatprep.mubr.bf16.mxu0 %v805
    %1122 = vmatmul.mubr.bf16.gmra.mrb[0].mxu0 %v158
    %v1123 = vpop.f32.mrb[0].mxu0
    %v1124 = vadd.f32 %v1041, %v1123
    %v1125 = vpop.f32.mrb[0].mxu0
    %v1126 = vadd.f32 %v1043, %v1125
    %v1127 = vpop.f32.mrb[0].mxu0
    %v1128 = vadd.f32 %v1045, %v1127
    %v1129 = vpop.f32.mrb[0].mxu0
    %v1130 = vadd.f32 %v1047, %v1129
    %1131 = vmatprep.mubr.bf16.mxu0 %v808
    %1132 = vmatmul.mubr.bf16.gmra.mrb[0].mxu0 %v162
    %v1133 = vpop.f32.mrb[0].mxu0
    %v1134 = vadd.f32 %v1051, %v1133
    %v1135 = vpop.f32.mrb[0].mxu0
    %v1136 = vadd.f32 %v1053, %v1135
    %v1137 = vpop.f32.mrb[0].mxu0
    %v1138 = vadd.f32 %v1055, %v1137
    %v1139 = vpop.f32.mrb[0].mxu0
    %v1140 = vadd.f32 %v1057, %v1139
    %1141 = vdwg.mxu0
    %1142 = vmatprep.subr.bf16.mxu0 %v589
    %1143 = vmatpush1.bf16.msra.mxu0 %v588
    %1144 = vmatprep.subr.bf16.mxu0 %v596
    %1145 = vmatpush1.bf16.msra.mxu0 %v595
    %1146 = vmatprep.subr.bf16.mxu0 %v603
    %1147 = vmatpush1.bf16.msra.mxu0 %v602
    %1148 = vmatprep.subr.bf16.mxu0 %v610
    %1149 = vmatpush1.bf16.msra.mxu0 %v609
    %1150 = vmatprep.subr.bf16.mxu0 %v617
    %1151 = vmatpush1.bf16.msra.mxu0 %v616
    %1152 = vmatprep.subr.bf16.mxu0 %v624
    %1153 = vmatpush1.bf16.msra.mxu0 %v623
    %1154 = vmatprep.subr.bf16.mxu0 %v631
    %1155 = vmatpush1.bf16.msra.mxu0 %v630
    %1156 = vmatprep.subr.bf16.mxu0 %v638
    %1157 = vmatpush1.bf16.msra.mxu0 %v637
    %1158 = vmatprep.subr.bf16.mxu0 %v645
    %1159 = vmatpush1.bf16.msra.mxu0 %v644
    %1160 = vmatprep.subr.bf16.mxu0 %v652
    %1161 = vmatpush1.bf16.msra.mxu0 %v651
    %1162 = vmatprep.subr.bf16.mxu0 %v659
    %1163 = vmatpush1.bf16.msra.mxu0 %v658
    %1164 = vmatprep.subr.bf16.mxu0 %v666
    %1165 = vmatpush1.bf16.msra.mxu0 %v665
    %1166 = vmatprep.subr.bf16.mxu0 %v673
    %1167 = vmatpush1.bf16.msra.mxu0 %v672
    %1168 = vmatprep.subr.bf16.mxu0 %v680
    %1169 = vmatpush1.bf16.msra.mxu0 %v679
    %1170 = vmatprep.subr.bf16.mxu0 %v687
    %1171 = vmatpush1.bf16.msra.mxu0 %v686
    %1172 = vmatprep.subr.bf16.mxu0 %v694
    %1173 = vmatpush1.bf16.msra.mxu0 %v693
    %1174 = vmatprep.mubr.bf16.mxu0 %v145
    %1175 = vmatmul.mubr.bf16.gmra.mrb[0].mxu0 %v144
    %v1176 = vpop.f32.mrb[0].mxu0
    %v1177 = vadd.f32 0.0, %v1176
    %v1178 = vpop.f32.mrb[0].mxu0
    %v1179 = vadd.f32 0.0, %v1178
    %v1180 = vpop.f32.mrb[0].mxu0
    %v1181 = vadd.f32 0.0, %v1180
    %v1182 = vpop.f32.mrb[0].mxu0
    %v1183 = vadd.f32 0.0, %v1182
    %1184 = vmatprep.mubr.bf16.mxu0 %v149
    %1185 = vmatmul.mubr.bf16.gmra.mrb[0].mxu0 %v148
    %v1186 = vpop.f32.mrb[0].mxu0
    %v1187 = vadd.f32 0.0, %v1186
    %v1188 = vpop.f32.mrb[0].mxu0
    %v1189 = vadd.f32 0.0, %v1188
    %v1190 = vpop.f32.mrb[0].mxu0
    %v1191 = vadd.f32 0.0, %v1190
    %v1192 = vpop.f32.mrb[0].mxu0
    %v1193 = vadd.f32 0.0, %v1192
    %1194 = vmatprep.mubr.bf16.mxu0 %v153
    %1195 = vmatmul.mubr.bf16.gmra.mrb[0].mxu0 %v152
    %v1196 = vpop.f32.mrb[0].mxu0
    %v1197 = vadd.f32 0.0, %v1196
    %v1198 = vpop.f32.mrb[0].mxu0
    %v1199 = vadd.f32 0.0, %v1198
    %v1200 = vpop.f32.mrb[0].mxu0
    %v1201 = vadd.f32 0.0, %v1200
    %v1202 = vpop.f32.mrb[0].mxu0
    %v1203 = vadd.f32 0.0, %v1202
    %1204 = vmatprep.mubr.bf16.mxu0 %v157
    %1205 = vmatmul.mubr.bf16.gmra.mrb[0].mxu0 %v156
    %v1206 = vpop.f32.mrb[0].mxu0
    %v1207 = vadd.f32 0.0, %v1206
    %v1208 = vpop.f32.mrb[0].mxu0
    %v1209 = vadd.f32 0.0, %v1208
    %v1210 = vpop.f32.mrb[0].mxu0
    %v1211 = vadd.f32 0.0, %v1210
    %v1212 = vpop.f32.mrb[0].mxu0
    %v1213 = vadd.f32 0.0, %v1212
    %1214 = vmatprep.mubr.bf16.mxu0 %v161
    %1215 = vmatmul.mubr.bf16.gmra.mrb[0].mxu0 %v160
    %v1216 = vpop.f32.mrb[0].mxu0
    %v1217 = vadd.f32 0.0, %v1216
    %v1218 = vpop.f32.mrb[0].mxu0
    %v1219 = vadd.f32 0.0, %v1218
    %v1220 = vpop.f32.mrb[0].mxu0
    %v1221 = vadd.f32 0.0, %v1220
    %v1222 = vpop.f32.mrb[0].mxu0
    %v1223 = vadd.f32 0.0, %v1222
    %1224 = vdwg.mxu0
    %1225 = vmatprep.subr.bf16.mxu0 %v701
    %1226 = vmatpush1.bf16.msra.mxu0 %v700
    %1227 = vmatprep.subr.bf16.mxu0 %v708
    %1228 = vmatpush1.bf16.msra.mxu0 %v707
    %1229 = vmatprep.subr.bf16.mxu0 %v715
    %1230 = vmatpush1.bf16.msra.mxu0 %v714
    %1231 = vmatprep.subr.bf16.mxu0 %v722
    %1232 = vmatpush1.bf16.msra.mxu0 %v721
    %1233 = vmatprep.subr.bf16.mxu0 %v729
    %1234 = vmatpush1.bf16.msra.mxu0 %v728
    %1235 = vmatprep.subr.bf16.mxu0 %v736
    %1236 = vmatpush1.bf16.msra.mxu0 %v735
    %1237 = vmatprep.subr.bf16.mxu0 %v743
    %1238 = vmatpush1.bf16.msra.mxu0 %v742
    %1239 = vmatprep.subr.bf16.mxu0 %v750
    %1240 = vmatpush1.bf16.msra.mxu0 %v749
    %1241 = vmatprep.subr.bf16.mxu0 %v757
    %1242 = vmatpush1.bf16.msra.mxu0 %v756
    %1243 = vmatprep.subr.bf16.mxu0 %v764
    %1244 = vmatpush1.bf16.msra.mxu0 %v763
    %1245 = vmatprep.subr.bf16.mxu0 %v771
    %1246 = vmatpush1.bf16.msra.mxu0 %v770
    %1247 = vmatprep.subr.bf16.mxu0 %v778
    %1248 = vmatpush1.bf16.msra.mxu0 %v777
    %1249 = vmatprep.subr.bf16.mxu0 %v785
    %1250 = vmatpush1.bf16.msra.mxu0 %v784
    %1251 = vmatprep.subr.bf16.mxu0 %v792
    %1252 = vmatpush1.bf16.msra.mxu0 %v791
    %1253 = vmatprep.subr.bf16.mxu0 0
    %1254 = vmatpush1.bf16.msra.mxu0 0
    %1255 = vmatprep.subr.bf16.mxu0 0
    %1256 = vmatpush1.bf16.msra.mxu0 0
    %1257 = vmatprep.mubr.bf16.mxu0 %v796
    %1258 = vmatmul.mubr.bf16.gmra.mrb[0].mxu0 %v146
    %v1259 = vpop.f32.mrb[0].mxu0
    %v1260 = vadd.f32 %v1177, %v1259
    %v1261 = vpop.f32.mrb[0].mxu0
    %v1262 = vadd.f32 %v1179, %v1261
    %v1263 = vpop.f32.mrb[0].mxu0
    %v1264 = vadd.f32 %v1181, %v1263
    %v1265 = vpop.f32.mrb[0].mxu0
    %v1266 = vadd.f32 %v1183, %v1265
    %1267 = vmatprep.mubr.bf16.mxu0 %v799
    %1268 = vmatmul.mubr.bf16.gmra.mrb[0].mxu0 %v150
    %v1269 = vpop.f32.mrb[0].mxu0
    %v1270 = vadd.f32 %v1187, %v1269
    %v1271 = vpop.f32.mrb[0].mxu0
    %v1272 = vadd.f32 %v1189, %v1271
    %v1273 = vpop.f32.mrb[0].mxu0
    %v1274 = vadd.f32 %v1191, %v1273
    %v1275 = vpop.f32.mrb[0].mxu0
    %v1276 = vadd.f32 %v1193, %v1275
    %1277 = vmatprep.mubr.bf16.mxu0 %v802
    %1278 = vmatmul.mubr.bf16.gmra.mrb[0].mxu0 %v154
    %v1279 = vpop.f32.mrb[0].mxu0
    %v1280 = vadd.f32 %v1197, %v1279
    %v1281 = vpop.f32.mrb[0].mxu0
    %v1282 = vadd.f32 %v1199, %v1281
    %v1283 = vpop.f32.mrb[0].mxu0
    %v1284 = vadd.f32 %v1201, %v1283
    %v1285 = vpop.f32.mrb[0].mxu0
    %v1286 = vadd.f32 %v1203, %v1285
    %1287 = vmatprep.mubr.bf16.mxu0 %v805
    %1288 = vmatmul.mubr.bf16.gmra.mrb[0].mxu0 %v158
    %v1289 = vpop.f32.mrb[0].mxu0
    %v1290 = vadd.f32 %v1207, %v1289
    %v1291 = vpop.f32.mrb[0].mxu0
    %v1292 = vadd.f32 %v1209, %v1291
    %v1293 = vpop.f32.mrb[0].mxu0
    %v1294 = vadd.f32 %v1211, %v1293
    %v1295 = vpop.f32.mrb[0].mxu0
    %v1296 = vadd.f32 %v1213, %v1295
    %1297 = vmatprep.mubr.bf16.mxu0 %v808
    %1298 = vmatmul.mubr.bf16.gmra.mrb[0].mxu0 %v162
    %v1299 = vpop.f32.mrb[0].mxu0
    %v1300 = vadd.f32 %v1217, %v1299
    %v1301 = vpop.f32.mrb[0].mxu0
    %v1302 = vadd.f32 %v1219, %v1301
    %v1303 = vpop.f32.mrb[0].mxu0
    %v1304 = vadd.f32 %v1221, %v1303
    %v1305 = vpop.f32.mrb[0].mxu0
    %v1306 = vadd.f32 %v1223, %v1305
    %1307 = vdwg.mxu0
    %1308 = vmatprep.subr.bf16.mxu0 0
    %1309 = vmatpush1.bf16.msra.mxu0 %v590
    %1310 = vmatprep.subr.bf16.mxu0 0
    %1311 = vmatpush1.bf16.msra.mxu0 %v597
    %1312 = vmatprep.subr.bf16.mxu0 0
    %1313 = vmatpush1.bf16.msra.mxu0 %v604
    %1314 = vmatprep.subr.bf16.mxu0 0
    %1315 = vmatpush1.bf16.msra.mxu0 %v611
    %1316 = vmatprep.subr.bf16.mxu0 0
    %1317 = vmatpush1.bf16.msra.mxu0 %v618
    %1318 = vmatprep.subr.bf16.mxu0 0
    %1319 = vmatpush1.bf16.msra.mxu0 %v625
    %1320 = vmatprep.subr.bf16.mxu0 0
    %1321 = vmatpush1.bf16.msra.mxu0 %v632
    %1322 = vmatprep.subr.bf16.mxu0 0
    %1323 = vmatpush1.bf16.msra.mxu0 %v639
    %1324 = vmatprep.subr.bf16.mxu0 0
    %1325 = vmatpush1.bf16.msra.mxu0 %v646
    %1326 = vmatprep.subr.bf16.mxu0 0
    %1327 = vmatpush1.bf16.msra.mxu0 %v653
    %1328 = vmatprep.subr.bf16.mxu0 0
    %1329 = vmatpush1.bf16.msra.mxu0 %v660
    %1330 = vmatprep.subr.bf16.mxu0 0
    %1331 = vmatpush1.bf16.msra.mxu0 %v667
    %1332 = vmatprep.subr.bf16.mxu0 0
    %1333 = vmatpush1.bf16.msra.mxu0 %v674
    %1334 = vmatprep.subr.bf16.mxu0 0
    %1335 = vmatpush1.bf16.msra.mxu0 %v681
    %1336 = vmatprep.subr.bf16.mxu0 0
    %1337 = vmatpush1.bf16.msra.mxu0 %v688
    %1338 = vmatprep.subr.bf16.mxu0 0
    %1339 = vmatpush1.bf16.msra.mxu0 %v695
    %1340 = vmatprep.mubr.bf16.mxu0 %v145
    %1341 = vmatmul.mubr.bf16.gmra.mrb[0].mxu0 %v144
    %v1342 = vpop.f32.mrb[0].mxu0
    %v1343 = vadd.f32 0.0, %v1342
    %v1344 = vpop.f32.mrb[0].mxu0
    %v1345 = vpop.f32.mrb[0].mxu0
    %v1346 = vadd.f32 0.0, %v1345
    %v1347 = vpop.f32.mrb[0].mxu0
    %1348 = vmatprep.mubr.bf16.mxu0 %v149
    %1349 = vmatmul.mubr.bf16.gmra.mrb[0].mxu0 %v148
    %v1350 = vpop.f32.mrb[0].mxu0
    %v1351 = vadd.f32 0.0, %v1350
    %v1352 = vpop.f32.mrb[0].mxu0
    %v1353 = vpop.f32.mrb[0].mxu0
    %v1354 = vadd.f32 0.0, %v1353
    %v1355 = vpop.f32.mrb[0].mxu0
    %1356 = vmatprep.mubr.bf16.mxu0 %v153
    %1357 = vmatmul.mubr.bf16.gmra.mrb[0].mxu0 %v152
    %v1358 = vpop.f32.mrb[0].mxu0
    %v1359 = vadd.f32 0.0, %v1358
    %v1360 = vpop.f32.mrb[0].mxu0
    %v1361 = vpop.f32.mrb[0].mxu0
    %v1362 = vadd.f32 0.0, %v1361
    %v1363 = vpop.f32.mrb[0].mxu0
    %1364 = vmatprep.mubr.bf16.mxu0 %v157
    %1365 = vmatmul.mubr.bf16.gmra.mrb[0].mxu0 %v156
    %v1366 = vpop.f32.mrb[0].mxu0
    %v1367 = vadd.f32 0.0, %v1366
    %v1368 = vpop.f32.mrb[0].mxu0
    %v1369 = vpop.f32.mrb[0].mxu0
    %v1370 = vadd.f32 0.0, %v1369
    %v1371 = vpop.f32.mrb[0].mxu0
    %1372 = vmatprep.mubr.bf16.mxu0 %v161
    %1373 = vmatmul.mubr.bf16.gmra.mrb[0].mxu0 %v160
    %v1374 = vpop.f32.mrb[0].mxu0
    %v1375 = vadd.f32 0.0, %v1374
    %v1376 = vpop.f32.mrb[0].mxu0
    %v1377 = vpop.f32.mrb[0].mxu0
    %v1378 = vadd.f32 0.0, %v1377
    %v1379 = vpop.f32.mrb[0].mxu0
    %1380 = vdwg.mxu0
    %1381 = vmatprep.subr.bf16.mxu0 0
    %1382 = vmatpush1.bf16.msra.mxu0 %v702
    %1383 = vmatprep.subr.bf16.mxu0 0
    %1384 = vmatpush1.bf16.msra.mxu0 %v709
    %1385 = vmatprep.subr.bf16.mxu0 0
    %1386 = vmatpush1.bf16.msra.mxu0 %v716
    %1387 = vmatprep.subr.bf16.mxu0 0
    %1388 = vmatpush1.bf16.msra.mxu0 %v723
    %1389 = vmatprep.subr.bf16.mxu0 0
    %1390 = vmatpush1.bf16.msra.mxu0 %v730
    %1391 = vmatprep.subr.bf16.mxu0 0
    %1392 = vmatpush1.bf16.msra.mxu0 %v737
    %1393 = vmatprep.subr.bf16.mxu0 0
    %1394 = vmatpush1.bf16.msra.mxu0 %v744
    %1395 = vmatprep.subr.bf16.mxu0 0
    %1396 = vmatpush1.bf16.msra.mxu0 %v751
    %1397 = vmatprep.subr.bf16.mxu0 0
    %1398 = vmatpush1.bf16.msra.mxu0 %v758
    %1399 = vmatprep.subr.bf16.mxu0 0
    %1400 = vmatpush1.bf16.msra.mxu0 %v765
    %1401 = vmatprep.subr.bf16.mxu0 0
    %1402 = vmatpush1.bf16.msra.mxu0 %v772
    %1403 = vmatprep.subr.bf16.mxu0 0
    %1404 = vmatpush1.bf16.msra.mxu0 %v779
    %1405 = vmatprep.subr.bf16.mxu0 0
    %1406 = vmatpush1.bf16.msra.mxu0 %v786
    %1407 = vmatprep.subr.bf16.mxu0 0
    %1408 = vmatpush1.bf16.msra.mxu0 %v793
    %1409 = vmatprep.subr.bf16.mxu0 0
    %1410 = vmatpush1.bf16.msra.mxu0 0
    %1411 = vmatprep.subr.bf16.mxu0 0
    %1412 = vmatpush1.bf16.msra.mxu0 0
    %1413 = vmatprep.mubr.bf16.mxu0 %v796
    %1414 = vmatmul.mubr.bf16.gmra.mrb[0].mxu0 %v146
    %v1415 = vpop.f32.mrb[0].mxu0
    %v1416 = vadd.f32 %v1343, %v1415
    %v1417 = vpop.f32.mrb[0].mxu0
    %v1418 = vpop.f32.mrb[0].mxu0
    %v1419 = vadd.f32 %v1346, %v1418
    %v1420 = vpop.f32.mrb[0].mxu0
    %1421 = vmatprep.mubr.bf16.mxu0 %v799
    %1422 = vmatmul.mubr.bf16.gmra.mrb[0].mxu0 %v150
    %v1423 = vpop.f32.mrb[0].mxu0
    %v1424 = vadd.f32 %v1351, %v1423
    %v1425 = vpop.f32.mrb[0].mxu0
    %v1426 = vpop.f32.mrb[0].mxu0
    %v1427 = vadd.f32 %v1354, %v1426
    %v1428 = vpop.f32.mrb[0].mxu0
    %1429 = vmatprep.mubr.bf16.mxu0 %v802
    %1430 = vmatmul.mubr.bf16.gmra.mrb[0].mxu0 %v154
    %v1431 = vpop.f32.mrb[0].mxu0
    %v1432 = vadd.f32 %v1359, %v1431
    %v1433 = vpop.f32.mrb[0].mxu0
    %v1434 = vpop.f32.mrb[0].mxu0
    %v1435 = vadd.f32 %v1362, %v1434
    %v1436 = vpop.f32.mrb[0].mxu0
    %1437 = vmatprep.mubr.bf16.mxu0 %v805
    %1438 = vmatmul.mubr.bf16.gmra.mrb[0].mxu0 %v158
    %v1439 = vpop.f32.mrb[0].mxu0
    %v1440 = vadd.f32 %v1367, %v1439
    %v1441 = vpop.f32.mrb[0].mxu0
    %v1442 = vpop.f32.mrb[0].mxu0
    %v1443 = vadd.f32 %v1370, %v1442
    %v1444 = vpop.f32.mrb[0].mxu0
    %1445 = vmatprep.mubr.bf16.mxu0 %v808
    %1446 = vmatmul.mubr.bf16.gmra.mrb[0].mxu0 %v162
    %v1447 = vpop.f32.mrb[0].mxu0
    %v1448 = vadd.f32 %v1375, %v1447
    %v1449 = vpop.f32.mrb[0].mxu0
    %v1450 = vpop.f32.mrb[0].mxu0
    %v1451 = vadd.f32 %v1378, %v1450
    %v1452 = vpop.f32.mrb[0].mxu0
    %1453 = vdwg.mxu0
    %1454 = vst [vmem:[#allocation2] sm:$0xff] %v928
    %1455 = vst [vmem:[#allocation2 + $0x8] sm:$0xff] %v930
    %1456 = vst [vmem:[#allocation2 + $0x10] sm:$0xff] %v1094
    %1457 = vst [vmem:[#allocation2 + $0x18] sm:$0xff] %v1096
    %1458 = vst [vmem:[#allocation2 + $0x20] sm:$0xff] %v1260
    %1459 = vst [vmem:[#allocation2 + $0x28] sm:$0xff] %v1262
    %vm1460 = vcmask 130048
    %1461 = vst.msk [vmem:[#allocation2 + $0x30] sm:$0xff] %vm1460, %v1416
    %1462 = vst [vmem:[#allocation2 + $0x38] sm:$0xff] %v932
    %1463 = vst [vmem:[#allocation2 + $0x40] sm:$0xff] %v934
    %1464 = vst [vmem:[#allocation2 + $0x48] sm:$0xff] %v1098
    %1465 = vst [vmem:[#allocation2 + $0x50] sm:$0xff] %v1100
    %1466 = vst [vmem:[#allocation2 + $0x58] sm:$0xff] %v1264
    %1467 = vst [vmem:[#allocation2 + $0x60] sm:$0xff] %v1266
    %1468 = vst.msk [vmem:[#allocation2 + $0x68] sm:$0xff] %vm1460, %v1419
    %1469 = vst [vmem:[#allocation2 + $0x70] sm:$0xff] %v938
    %1470 = vst [vmem:[#allocation2 + $0x78] sm:$0xff] %v940
    %1471 = vst [vmem:[#allocation2 + $0x80] sm:$0xff] %v1104
    %1472 = vst [vmem:[#allocation2 + $0x88] sm:$0xff] %v1106
    %1473 = vst [vmem:[#allocation2 + $0x90] sm:$0xff] %v1270
    %1474 = vst [vmem:[#allocation2 + $0x98] sm:$0xff] %v1272
    %1475 = vst.msk [vmem:[#allocation2 + $0xa0] sm:$0xff] %vm1460, %v1424
    %1476 = vst [vmem:[#allocation2 + $0xa8] sm:$0xff] %v942
    %1477 = vst [vmem:[#allocation2 + $0xb0] sm:$0xff] %v944
    %1478 = vst [vmem:[#allocation2 + $0xb8] sm:$0xff] %v1108
    %1479 = vst [vmem:[#allocation2 + $0xc0] sm:$0xff] %v1110
    %1480 = vst [vmem:[#allocation2 + $0xc8] sm:$0xff] %v1274
    %1481 = vst [vmem:[#allocation2 + $0xd0] sm:$0xff] %v1276
    %1482 = vst.msk [vmem:[#allocation2 + $0xd8] sm:$0xff] %vm1460, %v1427
    %1483 = vst [vmem:[#allocation2 + $0xe0] sm:$0xff] %v948
    %1484 = vst [vmem:[#allocation2 + $0xe8] sm:$0xff] %v950
    %1485 = vst [vmem:[#allocation2 + $0xf0] sm:$0xff] %v1114
    %1486 = vst [vmem:[#allocation2 + $0xf8] sm:$0xff] %v1116
    %1487 = vst [vmem:[#allocation2 + $0x100] sm:$0xff] %v1280
    %1488 = vst [vmem:[#allocation2 + $0x108] sm:$0xff] %v1282
    %1489 = vst.msk [vmem:[#allocation2 + $0x110] sm:$0xff] %vm1460, %v1432
    %1490 = vst [vmem:[#allocation2 + $0x118] sm:$0xff] %v952
    %1491 = vst [vmem:[#allocation2 + $0x120] sm:$0xff] %v954
    %1492 = vst [vmem:[#allocation2 + $0x128] sm:$0xff] %v1118
    %1493 = vst [vmem:[#allocation2 + $0x130] sm:$0xff] %v1120
    %1494 = vst [vmem:[#allocation2 + $0x138] sm:$0xff] %v1284
    %1495 = vst [vmem:[#allocation2 + $0x140] sm:$0xff] %v1286
    %1496 = vst.msk [vmem:[#allocation2 + $0x148] sm:$0xff] %vm1460, %v1435
    %1497 = vst [vmem:[#allocation2 + $0x150] sm:$0xff] %v958
    %1498 = vst [vmem:[#allocation2 + $0x158] sm:$0xff] %v960
    %1499 = vst [vmem:[#allocation2 + $0x160] sm:$0xff] %v1124
    %1500 = vst [vmem:[#allocation2 + $0x168] sm:$0xff] %v1126
    %1501 = vst [vmem:[#allocation2 + $0x170] sm:$0xff] %v1290
    %1502 = vst [vmem:[#allocation2 + $0x178] sm:$0xff] %v1292
    %1503 = vst.msk [vmem:[#allocation2 + $0x180] sm:$0xff] %vm1460, %v1440
    %1504 = vst [vmem:[#allocation2 + $0x188] sm:$0xff] %v962
    %1505 = vst [vmem:[#allocation2 + $0x190] sm:$0xff] %v964
    %1506 = vst [vmem:[#allocation2 + $0x198] sm:$0xff] %v1128
    %1507 = vst [vmem:[#allocation2 + $0x1a0] sm:$0xff] %v1130
    %1508 = vst [vmem:[#allocation2 + $0x1a8] sm:$0xff] %v1294
    %1509 = vst [vmem:[#allocation2 + $0x1b0] sm:$0xff] %v1296
    %1510 = vst.msk [vmem:[#allocation2 + $0x1b8] sm:$0xff] %vm1460, %v1443
    %1511 = vst [vmem:[#allocation2 + $0x1c0] sm:$0xff] %v968
    %1512 = vst [vmem:[#allocation2 + $0x1c8] sm:$0xff] %v970
    %1513 = vst [vmem:[#allocation2 + $0x1d0] sm:$0xff] %v1134
    %1514 = vst [vmem:[#allocation2 + $0x1d8] sm:$0xff] %v1136
    %1515 = vst [vmem:[#allocation2 + $0x1e0] sm:$0xff] %v1300
    %1516 = vst [vmem:[#allocation2 + $0x1e8] sm:$0xff] %v1302
    %1517 = vst.msk [vmem:[#allocation2 + $0x1f0] sm:$0xff] %vm1460, %v1448
    %1518 = vst [vmem:[#allocation2 + $0x1f8] sm:$0xff] %v972
    %1519 = vst [vmem:[#allocation2 + $0x200] sm:$0xff] %v974
    %1520 = vst [vmem:[#allocation2 + $0x208] sm:$0xff] %v1138
    %1521 = vst [vmem:[#allocation2 + $0x210] sm:$0xff] %v1140
    %1522 = vst [vmem:[#allocation2 + $0x218] sm:$0xff] %v1304
    %1523 = vst [vmem:[#allocation2 + $0x220] sm:$0xff] %v1306
    %1524 = vst.msk [vmem:[#allocation2 + $0x228] sm:$0xff] %vm1460, %v1451
    // Predicated region
    $region14: #{tpu_custom_call.1} parent=1 // pred_check
      _
    $region15: #{tpu_custom_call.1} parent=1 // pred_check_branch
      %1526 = sbr.rel (0) target = $region17
    $region16: #{tpu_custom_call.1} parent=1 // pred_region
      %s1528 = ssub.s32 8960, 8960
      %1529 = vsyncadd [#allocation3], %s1528
      %s1530 = sshll.u32 [#allocation2], 4
      %s1531 = int_to_ptr.vmem [resolvable:$true] %s1530
      %1536 = dma.vmem_to_hbm [thread:$0]  %s1531, 8960, %s3, [#allocation3], 896, 896, 56
    $region17: #{tpu_custom_call.1} parent=1 // pred_fallthru
      _
    // Predicated region
    $region18: #{tpu_custom_call.1} parent=1 // pred_check
      _
    $region19: #{tpu_custom_call.1} parent=1 // pred_check_branch
      %1538 = sbr.rel (0) target = $region21
    $region20: #{tpu_custom_call.1} parent=1 // pred_region
      %1539 = dma.done [#allocation3], 8960
    $region21: #{tpu_custom_call.1} parent=1 // pred_fallthru
      _
    %1540 = vsyncpa [#allocation3], 1

</llo_original>
